<compile_context>
chip_gen: v7x
topology: tpu7x:2x2x1
jax: 0.10.0
libtpu: 0.0.40
codegen_flags: <defaults>
</compile_context>

<pallas_src>
import jax
import jax.numpy as jnp
from jax import lax
from jax.experimental import pallas as pl
from jax.experimental.pallas import tpu as pltpu


_VMEM_LIMIT_BYTES = 48 << 20   # below v7x's 64 MiB physical VMEM; ample on v5e/v6e (128 MiB)


# ----------------------------------------------------------------------------
# Tile picking (rows of the BEV map; any H is fine -- the tail is masked in-kernel)
# ----------------------------------------------------------------------------
def _pick_row_tile(H, W, C, *, vmem_tile_budget_bytes=16 << 20, max_rows=None):
    """Rows per tile.  Budget ~16*C bytes per pixel: double-buffered bf16 in+out tiles
    (8*C) plus the in-kernel f32 gated-activation intermediate (~4*C) plus headroom.
    Conservative enough for v7x's 64 MiB VMEM; raise the budget on v5e/v6e if desired."""
    max_pixels = max(1, vmem_tile_budget_bytes // (16 * C))
    th = max(1, min(H, max_pixels // max(W, 1)))
    if max_rows is not None:
        th = max(1, min(th, max_rows))
    return th


# ----------------------------------------------------------------------------
# Pass 1: per-row-tile partial channel sum & max (ChannelAttention pooling)
# ----------------------------------------------------------------------------
def _make_channel_stats_call(N, H, W, C, Th):
    T = pl.cdiv(H, Th)

    def kernel(x_ref, sum_ref, max_ref):
        t = pl.program_id(1)
        x = x_ref[0].astype(jnp.float32)                       # (Th, W, C)
        s = jnp.sum(x, axis=1)                                 # (Th, C)
        m = jnp.max(x, axis=1)                                 # (Th, C)
        # mask rows past H (cdiv tail): 0 for the sum, -inf for the max
        row = t * Th + lax.broadcasted_iota(jnp.int32, (Th, C), 0)
        valid = row < H
        s = jnp.where(valid, s, 0.0)
        m = jnp.where(valid, m, -jnp.inf)
        sum_ref[0] = jnp.sum(s, axis=0, keepdims=True)         # (1, C)
        max_ref[0] = jnp.max(m, axis=0, keepdims=True)         # (1, C)

    out_map = lambda n, t: (n * T + t, 0, 0)
    call = pl.pallas_call(
        kernel,
        out_shape=(jax.ShapeDtypeStruct((N * T, 1, C), jnp.float32),
                   jax.ShapeDtypeStruct((N * T, 1, C), jnp.float32)),
        grid_spec=pltpu.PrefetchScalarGridSpec(
            num_scalar_prefetch=0,
            grid=(N, T),
            in_specs=[pl.BlockSpec((1, Th, W, C), lambda n, t: (n, t, 0, 0))],
            out_specs=(pl.BlockSpec((1, 1, C), out_map),
                       pl.BlockSpec((1, 1, C), out_map)),
        ),
        compiler_params=pltpu.CompilerParams(
            dimension_semantics=("parallel", "parallel"),
            vmem_limit_bytes=_VMEM_LIMIT_BYTES),
    )
    return call, T


# ----------------------------------------------------------------------------
# Pass 2 (fused): spatial stats of y = g*x + 3x3 conv + sigmoid + both gates
# ----------------------------------------------------------------------------
def _make_fused_spatial_call(N, H, W, C, Th):
    inv_c = 1.0 / C
    T = pl.cdiv(H, Th)

    def kernel(x_ref, x_top_ref, x_bot_ref, g_ref, w_ref, o_ref, m_scr, q_scr):
        t = pl.program_id(1)
        g = g_ref[0, 0]                                        # (1, C) f32 channel gate

        # ChannelAttention output y = g*x for this row tile; kept live for the epilogue
        # so the channel-gated tensor never round-trips through HBM.
        y = x_ref[0].astype(jnp.float32) * g                   # (Th, W, C)

        # SpatialAttention's 2-channel map: per-pixel channel mean / max of y
        m0 = jnp.sum(y, axis=-1) * inv_c                       # (Th, W)
        q0 = jnp.max(y, axis=-1)                               # (Th, W)
        row = t * Th + lax.broadcasted_iota(jnp.int32, (Th, W), 0)
        in_rows = row < H                                      # kill cdiv-tail garbage rows
        m0 = jnp.where(in_rows, m0, 0.0)
        q0 = jnp.where(in_rows, q0, 0.0)

        # 1-row halos (index maps clamp them into [0, H-1]); scale to zero when they
        # stand in for the 3x3 conv's SAME zero padding.
        tscale = (t > 0).astype(jnp.float32)
        bscale = ((t * Th + Th) < H).astype(jnp.float32)
        y_top = x_top_ref[0].astype(jnp.float32) * g           # (1, W, C)
        y_bot = x_bot_ref[0].astype(jnp.float32) * g
        m_top = jnp.sum(y_top, axis=-1) * inv_c * tscale       # (1, W)
        q_top = jnp.max(y_top, axis=-1) * tscale
        m_bot = jnp.sum(y_bot, axis=-1) * inv_c * bscale
        q_bot = jnp.max(y_bot, axis=-1) * bscale

        # assemble zero-padded (Th+2, W+2) maps in VMEM scratch
        zero = jnp.zeros((Th + 2, W + 2), jnp.float32)
        m_scr[...] = zero
        q_scr[...] = zero
        m_scr[pl.ds(1, Th), pl.ds(1, W)] = m0
        q_scr[pl.ds(1, Th), pl.ds(1, W)] = q0
        m_scr[pl.ds(0, 1), pl.ds(1, W)] = m_top
        q_scr[pl.ds(0, 1), pl.ds(1, W)] = q_top
        m_scr[pl.ds(Th + 1, 1), pl.ds(1, W)] = m_bot
        q_scr[pl.ds(Th + 1, 1), pl.ds(1, W)] = q_bot

        # SpatialAttention 3x3, 2->1 conv: 18 scalar * shifted-window FMAs on the VPU
        z = jnp.zeros((Th, W), jnp.float32)
        for kh in range(3):
            for kw in range(3):
                z = z + w_ref[kh * 3 + kw] * m_scr[pl.ds(kh, Th), pl.ds(kw, W)]
                z = z + w_ref[9 + kh * 3 + kw] * q_scr[pl.ds(kh, Th), pl.ds(kw, W)]

        # sigmoid on the EUP slot; apply the spatial gate to the channel-gated y
        s = pl.reciprocal(1.0 + jnp.exp(-z), approx=True)      # (Th, W)
        o_ref[0] = (y * s[..., None]).astype(o_ref.dtype)

    pix_map = lambda n, t: (n, t, 0, 0)
    top_map = lambda n, t: (n, jnp.maximum(t * Th - 1, 0), 0, 0)
    bot_map = lambda n, t: (n, jnp.minimum(t * Th + Th, H - 1), 0, 0)
    vec_map = lambda n, t: (n, 0, 0, 0)

    call = pl.pallas_call(
        kernel,
        out_shape=jax.ShapeDtypeStruct((N, H, W, C), jnp.bfloat16),
        grid_spec=pltpu.PrefetchScalarGridSpec(
            num_scalar_prefetch=0,
            grid=(N, T),
            in_specs=[pl.BlockSpec((1, Th, W, C), pix_map),                 # x tile (bf16)
                      pl.BlockSpec((1, 1, W, C), top_map),                  # x halo row above
                      pl.BlockSpec((1, 1, W, C), bot_map),                  # x halo row below
                      pl.BlockSpec((1, 1, 1, C), vec_map),                  # channel gate (f32)
                      pl.BlockSpec(memory_space=pltpu.MemorySpace.SMEM)],   # 3x3 conv weights
            out_specs=pl.BlockSpec((1, Th, W, C), pix_map),
            scratch_shapes=[pltpu.VMEM((Th + 2, W + 2), jnp.float32),       # mean map (padded)
                            pltpu.VMEM((Th + 2, W + 2), jnp.float32)],      # max map (padded)
        ),
        compiler_params=pltpu.CompilerParams(
            dimension_semantics=("parallel", "parallel"),
            vmem_limit_bytes=_VMEM_LIMIT_BYTES),
    )
    return call


# ----------------------------------------------------------------------------
# Parameters (ChannelAttention / SpatialAttention convs have no bias, no BN).
# ----------------------------------------------------------------------------
def make_attention_params(key, channels, ratio=16):
    ci = channels // ratio
    k1, k2, k3 = jax.random.split(key, 3)
    w1 = jax.random.normal(k1, (channels, ci), jnp.float32) / jnp.sqrt(channels)
    w2 = jax.random.normal(k2, (ci, channels), jnp.float32) / jnp.sqrt(ci)
    w_sa = jax.random.normal(k3, (3, 3, 2, 1), jnp.float32) / 3.0   # HWIO, 2->1
    return dict(w1=w1, w2=w2, w_sa=w_sa)


# ----------------------------------------------------------------------------
# Forward: ChannelAttention(256) -> SpatialAttention(3), channels-last
# ----------------------------------------------------------------------------
def channel_spatial_attention(x_nhwc, params, *, max_rows=None):
    N, H, W, C = x_nhwc.shape
    Th = _pick_row_tile(H, W, C, max_rows=max_rows)

    # channels-last end-to-end; stream activations as bf16 (accepted precision tradeoff).
    xb = x_nhwc.astype(jnp.bfloat16)

    # ---- pass 1: per-row-tile partial channel sum & max (f32), reduced in JAX ----
    stats_call, T = _make_channel_stats_call(N, H, W, C, Th)
    psum, pmax = stats_call(xb)
    csum = psum.reshape(N, T, C).sum(axis=1)
    cmax = pmax.reshape(N, T, C).max(axis=1)

    # Tiny (1,C) shared MLP + sigmoid in plain JAX (M=1 matmuls would waste the MXU).
    mlp = lambda v: jnp.maximum(v @ params["w1"], 0.0) @ params["w2"]
    g = jax.nn.sigmoid(mlp(csum * (1.0 / (H * W))) + mlp(cmax))
    g4 = g.reshape(N, 1, 1, C).astype(jnp.float32)

    # SpatialAttention conv weights, flattened for SMEM: index = ic*9 + kh*3 + kw.
    w_flat = jnp.transpose(params["w_sa"][..., 0], (2, 0, 1)).reshape(-1).astype(jnp.float32)

    # ---- pass 2 (fused): spatial stats of g*x + in-kernel 3x3 conv + both gates ----
    fused_call = _make_fused_spatial_call(N, H, W, C, Th)
    out = fused_call(xb, xb, xb, g4, w_flat)
    return out


# ----------------------------------------------------------------------------
# Pure-JAX reference (same math, f32 throughout)
# ----------------------------------------------------------------------------
def channel_spatial_attention_ref(x_nhwc, p):
    N, H, W, C = x_nhwc.shape
    x = x_nhwc.reshape(N, H * W, C)
    avg = jnp.mean(x, axis=1)
    mx = jnp.max(x, axis=1)
    mlp = lambda v: jnp.maximum(v @ p["w1"], 0.0) @ p["w2"]
    g = jax.nn.sigmoid(mlp(avg) + mlp(mx))[:, None, :]
    y = x * g
    cmean = jnp.mean(y, axis=-1, keepdims=True)
    cmax = jnp.max(y, axis=-1, keepdims=True)
    smap = jnp.concatenate([cmean, cmax], axis=-1).reshape(N, H, W, 2)
    z = jax.lax.conv_general_dilated(smap, p["w_sa"], (1, 1), "SAME",
                                     dimension_numbers=("NHWC", "HWIO", "NHWC"))
    s = jax.nn.sigmoid(z.reshape(N, H * W, 1))
    return (y * s).reshape(N, H, W, C)


# ----------------------------------------------------------------------------
if __name__ == "__main__":
    # x_conv4-like dense feature map: N=2, 256 channels, small BEV map with H NOT a
    # multiple of the row tile so the masked-tail / halo-clamping paths are exercised.
    N, C, H, W = 2, 256, 20, 16
    key = jax.random.PRNGKey(0)
    kx, kp = jax.random.split(key)
    x = jax.random.normal(kx, (N, H, W, C), jnp.float32)
    params = make_attention_params(kp, C, ratio=16)

    # Cap the row tile at 8 so the demo runs 3 row tiles per batch (halo + tail paths);
    # production shapes pick the tile from the VMEM budget automatically.
    fwd = jax.jit(lambda a, p: channel_spatial_attention(a, p, max_rows=8))
    out = jax.block_until_ready(fwd(x, params))

    # Reference sees the same bf16-rounded input the kernels stream.
    x_bf = x.astype(jnp.bfloat16).astype(jnp.float32)
    ref = jax.block_until_ready(channel_spatial_attention_ref(x_bf, params))

    assert out.shape == (N, H, W, C)
    out_f32 = out.astype(jnp.float32)
    err = float(jnp.max(jnp.abs(out_f32 - ref)))
    assert jnp.allclose(out_f32, ref, rtol=2e-2, atol=2e-2), f"max abs err {err}"

    print("KERNEL_OK")
</pallas_src>

<mosaic_0001>
module attributes {stable_mosaic.version = 11 : i64} {
  func.func @kernel(%arg0: i32, %arg1: i32, %arg2: memref<1x8x16x256xbf16, #tpu.memory_space<vmem>>, %arg3: memref<1x1x256xf32, #tpu.memory_space<vmem>>, %arg4: memref<1x1x256xf32, #tpu.memory_space<vmem>>) attributes {dimension_semantics = [#tpu.dimension_semantics<parallel>, #tpu.dimension_semantics<parallel>], iteration_bounds = array<i64: 2, 3>, scalar_prefetch = 0 : i64, scratch_operands = 0 : i64, tpu.core_type = #tpu.core_type<tc>, window_params = [{transform_indices = @transform_0, window_bounds = array<i64: 1, 8, 16, 256>}, {transform_indices = @transform_1, window_bounds = array<i64: 1, 1, 256>}, {transform_indices = @transform_2, window_bounds = array<i64: 1, 1, 256>}]} {
    %c0 = arith.constant 0 : index
    %c0_0 = arith.constant 0 : index
    %c0_1 = arith.constant 0 : index
    %c0_2 = arith.constant 0 : index
    %0 = vector.load %arg2[%c0, %c0_0, %c0_1, %c0_2] : memref<1x8x16x256xbf16, #tpu.memory_space<vmem>>, vector<1x8x16x256xbf16>
    %1 = vector.shape_cast %0 : vector<1x8x16x256xbf16> to vector<8x16x256xbf16>
    %2 = arith.extf %1 : vector<8x16x256xbf16> to vector<8x16x256xf32>
    %cst = arith.constant dense<0.000000e+00> : vector<8x256xf32>
    %3 = vector.multi_reduction <add>, %2, %cst [1] : vector<8x16x256xf32> to vector<8x256xf32>
    %cst_3 = arith.constant dense<0xFF800000> : vector<8x256xf32>
    %4 = vector.multi_reduction <maximumf>, %2, %cst_3 [1] : vector<8x16x256xf32> to vector<8x256xf32>
    %c8_i32 = arith.constant 8 : i32
    %5 = arith.muli %arg1, %c8_i32 : i32
    %6 = tpu.iota {dimensions = array<i32: 0>} : vector<8x256xi32>
    %7 = vector.broadcast %5 : i32 to vector<8x256xi32>
    %8 = arith.addi %7, %6 : vector<8x256xi32>
    %c20_i32 = arith.constant 20 : i32
    %9 = vector.broadcast %c20_i32 : i32 to vector<8x256xi32>
    %10 = arith.cmpi slt, %8, %9 : vector<8x256xi32>
    %cst_4 = arith.constant 0.000000e+00 : f32
    %11 = vector.broadcast %cst_4 : f32 to vector<8x256xf32>
    %12 = arith.select %10, %3, %11 : vector<8x256xi1>, vector<8x256xf32>
    %cst_5 = arith.constant 0xFF800000 : f32
    %13 = vector.broadcast %cst_5 : f32 to vector<8x256xf32>
    %14 = arith.select %10, %4, %13 : vector<8x256xi1>, vector<8x256xf32>
    %cst_6 = arith.constant dense<0.000000e+00> : vector<256xf32>
    %15 = vector.multi_reduction <add>, %12, %cst_6 [0] : vector<8x256xf32> to vector<256xf32>
    %16 = vector.shape_cast %15 : vector<256xf32> to vector<1x256xf32>
    %c0_7 = arith.constant 0 : index
    %c0_8 = arith.constant 0 : index
    %c0_9 = arith.constant 0 : index
    %17 = vector.load %arg3[%c0_7, %c0_8, %c0_9] : memref<1x1x256xf32, #tpu.memory_space<vmem>>, vector<1x1x256xf32>
    %18 = vector.shape_cast %17 : vector<1x1x256xf32> to vector<1x256xf32>
    %19 = vector.shape_cast %16 : vector<1x256xf32> to vector<1x1x256xf32>
    tpu.vector_store %arg3[%c0_7, %c0_8, %c0_9], %19 {strides = array<i32>} : memref<1x1x256xf32, #tpu.memory_space<vmem>>, vector<1x1x256xf32>,
    %cst_10 = arith.constant dense<0xFF800000> : vector<256xf32>
    %20 = vector.multi_reduction <maximumf>, %14, %cst_10 [0] : vector<8x256xf32> to vector<256xf32>
    %21 = vector.shape_cast %20 : vector<256xf32> to vector<1x256xf32>
    %c0_11 = arith.constant 0 : index
    %c0_12 = arith.constant 0 : index
    %c0_13 = arith.constant 0 : index
    %22 = vector.load %arg4[%c0_11, %c0_12, %c0_13] : memref<1x1x256xf32, #tpu.memory_space<vmem>>, vector<1x1x256xf32>
    %23 = vector.shape_cast %22 : vector<1x1x256xf32> to vector<1x256xf32>
    %24 = vector.shape_cast %21 : vector<1x256xf32> to vector<1x1x256xf32>
    tpu.vector_store %arg4[%c0_11, %c0_12, %c0_13], %24 {strides = array<i32>} : memref<1x1x256xf32, #tpu.memory_space<vmem>>, vector<1x1x256xf32>,
    return
  }
  func.func @transform_0(%arg0: i32, %arg1: i32) -> (i32, i32, i32, i32) {
    %c0_i32 = arith.constant 0 : i32
    %c0_i32_0 = arith.constant 0 : i32
    %c0_i32_1 = arith.constant 0 : i32
    return %arg0, %arg1, %c0_i32, %c0_i32_0 : i32, i32, i32, i32
  }
  func.func @transform_1(%arg0: i32, %arg1: i32) -> (i32, i32, i32) {
    %c3_i32 = arith.constant 3 : i32
    %0 = arith.muli %arg0, %c3_i32 : i32
    %1 = arith.addi %0, %arg1 : i32
    %c0_i32 = arith.constant 0 : i32
    %c0_i32_0 = arith.constant 0 : i32
    %c0_i32_1 = arith.constant 0 : i32
    return %1, %c0_i32, %c0_i32_0 : i32, i32, i32
  }
  func.func @transform_2(%arg0: i32, %arg1: i32) -> (i32, i32, i32) {
    %c3_i32 = arith.constant 3 : i32
    %0 = arith.muli %arg0, %c3_i32 : i32
    %1 = arith.addi %0, %arg1 : i32
    %c0_i32 = arith.constant 0 : i32
    %c0_i32_0 = arith.constant 0 : i32
    %c0_i32_1 = arith.constant 0 : i32
    return %1, %c0_i32, %c0_i32_0 : i32, i32, i32
  }
}

module attributes {stable_mosaic.version = 11 : i64} {
  func.func @kernel(%arg0: i32, %arg1: i32, %arg2: memref<1x8x16x256xbf16, #tpu.memory_space<vmem>>, %arg3: memref<1x1x16x256xbf16, #tpu.memory_space<vmem>>, %arg4: memref<1x1x16x256xbf16, #tpu.memory_space<vmem>>, %arg5: memref<1x1x1x256xf32, #tpu.memory_space<vmem>>, %arg6: memref<18xf32, #tpu.memory_space<smem>>, %arg7: memref<1x8x16x256xbf16, #tpu.memory_space<vmem>>, %arg8: memref<10x18xf32, #tpu.memory_space<vmem>>, %arg9: memref<10x18xf32, #tpu.memory_space<vmem>>) attributes {dimension_semantics = [#tpu.dimension_semantics<parallel>, #tpu.dimension_semantics<parallel>], iteration_bounds = array<i64: 2, 3>, scalar_prefetch = 0 : i64, scratch_operands = 2 : i64, tpu.core_type = #tpu.core_type<tc>, window_params = [{transform_indices = @transform_0, window_bounds = array<i64: 1, 8, 16, 256>}, {transform_indices = @transform_1, window_bounds = array<i64: 1, 1, 16, 256>}, {transform_indices = @transform_2, window_bounds = array<i64: 1, 1, 16, 256>}, {transform_indices = @transform_3, window_bounds = array<i64: 1, 1, 1, 256>}, {transform_indices = @transform_4, window_bounds = array<i64: 18>}, {transform_indices = @transform_5, window_bounds = array<i64: 1, 8, 16, 256>}]} {
    %c0 = arith.constant 0 : index
    %c0_0 = arith.constant 0 : index
    %c0_1 = arith.constant 0 : index
    %c0_2 = arith.constant 0 : index
    %0 = vector.load %arg5[%c0, %c0_0, %c0_1, %c0_2] : memref<1x1x1x256xf32, #tpu.memory_space<vmem>>, vector<1x1x1x256xf32>
    %1 = vector.shape_cast %0 : vector<1x1x1x256xf32> to vector<1x256xf32>
    %c0_3 = arith.constant 0 : index
    %c0_4 = arith.constant 0 : index
    %c0_5 = arith.constant 0 : index
    %c0_6 = arith.constant 0 : index
    %2 = vector.load %arg2[%c0_3, %c0_4, %c0_5, %c0_6] : memref<1x8x16x256xbf16, #tpu.memory_space<vmem>>, vector<1x8x16x256xbf16>
    %3 = vector.shape_cast %2 : vector<1x8x16x256xbf16> to vector<8x16x256xbf16>
    %4 = arith.extf %3 : vector<8x16x256xbf16> to vector<8x16x256xf32>
    %5 = vector.shape_cast %1 : vector<1x256xf32> to vector<1x1x256xf32>
    %6 = vector.broadcast %5 : vector<1x1x256xf32> to vector<8x16x256xf32>
    %7 = arith.mulf %4, %6 : vector<8x16x256xf32>
    %cst = arith.constant dense<0.000000e+00> : vector<8x16xf32>
    %8 = vector.multi_reduction <add>, %7, %cst [2] : vector<8x16x256xf32> to vector<8x16xf32>
    %cst_7 = arith.constant 3.906250e-03 : f32
    %9 = vector.broadcast %cst_7 : f32 to vector<8x16xf32>
    %10 = arith.mulf %8, %9 : vector<8x16xf32>
    %cst_8 = arith.constant dense<0xFF800000> : vector<8x16xf32>
    %11 = vector.multi_reduction <maximumf>, %7, %cst_8 [2] : vector<8x16x256xf32> to vector<8x16xf32>
    %c8_i32 = arith.constant 8 : i32
    %12 = arith.muli %arg1, %c8_i32 : i32
    %13 = tpu.iota {dimensions = array<i32: 0>} : vector<8x16xi32>
    %14 = vector.broadcast %12 : i32 to vector<8x16xi32>
    %15 = arith.addi %14, %13 : vector<8x16xi32>
    %c20_i32 = arith.constant 20 : i32
    %16 = vector.broadcast %c20_i32 : i32 to vector<8x16xi32>
    %17 = arith.cmpi slt, %15, %16 : vector<8x16xi32>
    %cst_9 = arith.constant 0.000000e+00 : f32
    %18 = vector.broadcast %cst_9 : f32 to vector<8x16xf32>
    %19 = arith.select %17, %10, %18 : vector<8x16xi1>, vector<8x16xf32>
    %cst_10 = arith.constant 0.000000e+00 : f32
    %20 = vector.broadcast %cst_10 : f32 to vector<8x16xf32>
    %21 = arith.select %17, %11, %20 : vector<8x16xi1>, vector<8x16xf32>
    %c0_i32 = arith.constant 0 : i32
    %22 = arith.cmpi sgt, %arg1, %c0_i32 : i32
    %23 = arith.extui %22 : i1 to i32
    %24 = arith.sitofp %23 : i32 to f32
    %c8_i32_11 = arith.constant 8 : i32
    %25 = arith.muli %arg1, %c8_i32_11 : i32
    %c8_i32_12 = arith.constant 8 : i32
    %26 = arith.addi %25, %c8_i32_12 : i32
    %c20_i32_13 = arith.constant 20 : i32
    %27 = arith.cmpi slt, %26, %c20_i32_13 : i32
    %28 = arith.extui %27 : i1 to i32
    %29 = arith.sitofp %28 : i32 to f32
    %c0_14 = arith.constant 0 : index
    %c0_15 = arith.constant 0 : index
    %c0_16 = arith.constant 0 : index
    %c0_17 = arith.constant 0 : index
    %30 = vector.load %arg3[%c0_14, %c0_15, %c0_16, %c0_17] : memref<1x1x16x256xbf16, #tpu.memory_space<vmem>>, vector<1x1x16x256xbf16>
    %31 = vector.shape_cast %30 : vector<1x1x16x256xbf16> to vector<1x16x256xbf16>
    %32 = arith.extf %31 : vector<1x16x256xbf16> to vector<1x16x256xf32>
    %33 = vector.shape_cast %1 : vector<1x256xf32> to vector<1x1x256xf32>
    %34 = vector.broadcast %33 : vector<1x1x256xf32> to vector<1x16x256xf32>
    %35 = arith.mulf %32, %34 : vector<1x16x256xf32>
    %c0_18 = arith.constant 0 : index
    %c0_19 = arith.constant 0 : index
    %c0_20 = arith.constant 0 : index
    %c0_21 = arith.constant 0 : index
    %36 = vector.load %arg4[%c0_18, %c0_19, %c0_20, %c0_21] : memref<1x1x16x256xbf16, #tpu.memory_space<vmem>>, vector<1x1x16x256xbf16>
    %37 = vector.shape_cast %36 : vector<1x1x16x256xbf16> to vector<1x16x256xbf16>
    %38 = arith.extf %37 : vector<1x16x256xbf16> to vector<1x16x256xf32>
    %39 = vector.shape_cast %1 : vector<1x256xf32> to vector<1x1x256xf32>
    %40 = vector.broadcast %39 : vector<1x1x256xf32> to vector<1x16x256xf32>
    %41 = arith.mulf %38, %40 : vector<1x16x256xf32>
    %cst_22 = arith.constant dense<0.000000e+00> : vector<1x16xf32>
    %42 = vector.multi_reduction <add>, %35, %cst_22 [2] : vector<1x16x256xf32> to vector<1x16xf32>
    %cst_23 = arith.constant 3.906250e-03 : f32
    %43 = vector.broadcast %cst_23 : f32 to vector<1x16xf32>
    %44 = arith.mulf %42, %43 : vector<1x16xf32>
    %45 = vector.broadcast %24 : f32 to vector<1x16xf32>
    %46 = arith.mulf %44, %45 : vector<1x16xf32>
    %cst_24 = arith.constant dense<0xFF800000> : vector<1x16xf32>
    %47 = vector.multi_reduction <maximumf>, %35, %cst_24 [2] : vector<1x16x256xf32> to vector<1x16xf32>
    %48 = vector.broadcast %24 : f32 to vector<1x16xf32>
    %49 = arith.mulf %47, %48 : vector<1x16xf32>
    %cst_25 = arith.constant dense<0.000000e+00> : vector<1x16xf32>
    %50 = vector.multi_reduction <add>, %41, %cst_25 [2] : vector<1x16x256xf32> to vector<1x16xf32>
    %cst_26 = arith.constant 3.906250e-03 : f32
    %51 = vector.broadcast %cst_26 : f32 to vector<1x16xf32>
    %52 = arith.mulf %50, %51 : vector<1x16xf32>
    %53 = vector.broadcast %29 : f32 to vector<1x16xf32>
    %54 = arith.mulf %52, %53 : vector<1x16xf32>
    %cst_27 = arith.constant dense<0xFF800000> : vector<1x16xf32>
    %55 = vector.multi_reduction <maximumf>, %41, %cst_27 [2] : vector<1x16x256xf32> to vector<1x16xf32>
    %56 = vector.broadcast %29 : f32 to vector<1x16xf32>
    %57 = arith.mulf %55, %56 : vector<1x16xf32>
    %cst_28 = arith.constant 0.000000e+00 : f32
    %58 = vector.broadcast %cst_28 : f32 to vector<10x18xf32>
    %c0_29 = arith.constant 0 : index
    %c0_30 = arith.constant 0 : index
    %59 = vector.load %arg8[%c0_29, %c0_30] : memref<10x18xf32, #tpu.memory_space<vmem>>, vector<10x18xf32>
    tpu.vector_store %arg8[%c0_29, %c0_30], %58 {strides = array<i32>} : memref<10x18xf32, #tpu.memory_space<vmem>>, vector<10x18xf32>,
    %c0_31 = arith.constant 0 : index
    %c0_32 = arith.constant 0 : index
    %60 = vector.load %arg9[%c0_31, %c0_32] : memref<10x18xf32, #tpu.memory_space<vmem>>, vector<10x18xf32>
    tpu.vector_store %arg9[%c0_31, %c0_32], %58 {strides = array<i32>} : memref<10x18xf32, #tpu.memory_space<vmem>>, vector<10x18xf32>,
    %c1 = arith.constant 1 : index
    %c1_33 = arith.constant 1 : index
    %61 = vector.load %arg8[%c1, %c1_33] : memref<10x18xf32, #tpu.memory_space<vmem>>, vector<8x16xf32>
    tpu.vector_store %arg8[%c1, %c1_33], %19 {strides = array<i32>} : memref<10x18xf32, #tpu.memory_space<vmem>>, vector<8x16xf32>,
    %c1_34 = arith.constant 1 : index
    %c1_35 = arith.constant 1 : index
    %62 = vector.load %arg9[%c1_34, %c1_35] : memref<10x18xf32, #tpu.memory_space<vmem>>, vector<8x16xf32>
    tpu.vector_store %arg9[%c1_34, %c1_35], %21 {strides = array<i32>} : memref<10x18xf32, #tpu.memory_space<vmem>>, vector<8x16xf32>,
    %c0_36 = arith.constant 0 : index
    %c1_37 = arith.constant 1 : index
    %63 = vector.load %arg8[%c0_36, %c1_37] : memref<10x18xf32, #tpu.memory_space<vmem>>, vector<1x16xf32>
    tpu.vector_store %arg8[%c0_36, %c1_37], %46 {strides = array<i32>} : memref<10x18xf32, #tpu.memory_space<vmem>>, vector<1x16xf32>,
    %c0_38 = arith.constant 0 : index
    %c1_39 = arith.constant 1 : index
    %64 = vector.load %arg9[%c0_38, %c1_39] : memref<10x18xf32, #tpu.memory_space<vmem>>, vector<1x16xf32>
    tpu.vector_store %arg9[%c0_38, %c1_39], %49 {strides = array<i32>} : memref<10x18xf32, #tpu.memory_space<vmem>>, vector<1x16xf32>,
    %c9 = arith.constant 9 : index
    %c1_40 = arith.constant 1 : index
    %65 = vector.load %arg8[%c9, %c1_40] : memref<10x18xf32, #tpu.memory_space<vmem>>, vector<1x16xf32>
    tpu.vector_store %arg8[%c9, %c1_40], %54 {strides = array<i32>} : memref<10x18xf32, #tpu.memory_space<vmem>>, vector<1x16xf32>,
    %c9_41 = arith.constant 9 : index
    %c1_42 = arith.constant 1 : index
    %66 = vector.load %arg9[%c9_41, %c1_42] : memref<10x18xf32, #tpu.memory_space<vmem>>, vector<1x16xf32>
    tpu.vector_store %arg9[%c9_41, %c1_42], %57 {strides = array<i32>} : memref<10x18xf32, #tpu.memory_space<vmem>>, vector<1x16xf32>,
    %cst_43 = arith.constant 0.000000e+00 : f32
    %67 = vector.broadcast %cst_43 : f32 to vector<8x16xf32>
    %c0_44 = arith.constant 0 : index
    %68 = memref.load %arg6[%c0_44] : memref<18xf32, #tpu.memory_space<smem>>
    %c0_45 = arith.constant 0 : index
    %c0_46 = arith.constant 0 : index
    %69 = vector.load %arg8[%c0_45, %c0_46] : memref<10x18xf32, #tpu.memory_space<vmem>>, vector<8x16xf32>
    %70 = vector.broadcast %68 : f32 to vector<8x16xf32>
    %71 = arith.mulf %70, %69 : vector<8x16xf32>
    %72 = arith.addf %67, %71 : vector<8x16xf32>
    %c9_47 = arith.constant 9 : index
    %73 = memref.load %arg6[%c9_47] : memref<18xf32, #tpu.memory_space<smem>>
    %c0_48 = arith.constant 0 : index
    %c0_49 = arith.constant 0 : index
    %74 = vector.load %arg9[%c0_48, %c0_49] : memref<10x18xf32, #tpu.memory_space<vmem>>, vector<8x16xf32>
    %75 = vector.broadcast %73 : f32 to vector<8x16xf32>
    %76 = arith.mulf %75, %74 : vector<8x16xf32>
    %77 = arith.addf %72, %76 : vector<8x16xf32>
    %c1_50 = arith.constant 1 : index
    %78 = memref.load %arg6[%c1_50] : memref<18xf32, #tpu.memory_space<smem>>
    %c0_51 = arith.constant 0 : index
    %c1_52 = arith.constant 1 : index
    %79 = vector.load %arg8[%c0_51, %c1_52] : memref<10x18xf32, #tpu.memory_space<vmem>>, vector<8x16xf32>
    %80 = vector.broadcast %78 : f32 to vector<8x16xf32>
    %81 = arith.mulf %80, %79 : vector<8x16xf32>
    %82 = arith.addf %77, %81 : vector<8x16xf32>
    %c10 = arith.constant 10 : index
    %83 = memref.load %arg6[%c10] : memref<18xf32, #tpu.memory_space<smem>>
    %c0_53 = arith.constant 0 : index
    %c1_54 = arith.constant 1 : index
    %84 = vector.load %arg9[%c0_53, %c1_54] : memref<10x18xf32, #tpu.memory_space<vmem>>, vector<8x16xf32>
    %85 = vector.broadcast %83 : f32 to vector<8x16xf32>
    %86 = arith.mulf %85, %84 : vector<8x16xf32>
    %87 = arith.addf %82, %86 : vector<8x16xf32>
    %c2 = arith.constant 2 : index
    %88 = memref.load %arg6[%c2] : memref<18xf32, #tpu.memory_space<smem>>
    %c0_55 = arith.constant 0 : index
    %c2_56 = arith.constant 2 : index
    %89 = vector.load %arg8[%c0_55, %c2_56] : memref<10x18xf32, #tpu.memory_space<vmem>>, vector<8x16xf32>
    %90 = vector.broadcast %88 : f32 to vector<8x16xf32>
    %91 = arith.mulf %90, %89 : vector<8x16xf32>
    %92 = arith.addf %87, %91 : vector<8x16xf32>
    %c11 = arith.constant 11 : index
    %93 = memref.load %arg6[%c11] : memref<18xf32, #tpu.memory_space<smem>>
    %c0_57 = arith.constant 0 : index
    %c2_58 = arith.constant 2 : index
    %94 = vector.load %arg9[%c0_57, %c2_58] : memref<10x18xf32, #tpu.memory_space<vmem>>, vector<8x16xf32>
    %95 = vector.broadcast %93 : f32 to vector<8x16xf32>
    %96 = arith.mulf %95, %94 : vector<8x16xf32>
    %97 = arith.addf %92, %96 : vector<8x16xf32>
    %c3 = arith.constant 3 : index
    %98 = memref.load %arg6[%c3] : memref<18xf32, #tpu.memory_space<smem>>
    %c1_59 = arith.constant 1 : index
    %c0_60 = arith.constant 0 : index
    %99 = vector.load %arg8[%c1_59, %c0_60] : memref<10x18xf32, #tpu.memory_space<vmem>>, vector<8x16xf32>
    %100 = vector.broadcast %98 : f32 to vector<8x16xf32>
    %101 = arith.mulf %100, %99 : vector<8x16xf32>
    %102 = arith.addf %97, %101 : vector<8x16xf32>
    %c12 = arith.constant 12 : index
    %103 = memref.load %arg6[%c12] : memref<18xf32, #tpu.memory_space<smem>>
    %c1_61 = arith.constant 1 : index
    %c0_62 = arith.constant 0 : index
    %104 = vector.load %arg9[%c1_61, %c0_62] : memref<10x18xf32, #tpu.memory_space<vmem>>, vector<8x16xf32>
    %105 = vector.broadcast %103 : f32 to vector<8x16xf32>
    %106 = arith.mulf %105, %104 : vector<8x16xf32>
    %107 = arith.addf %102, %106 : vector<8x16xf32>
    %c4 = arith.constant 4 : index
    %108 = memref.load %arg6[%c4] : memref<18xf32, #tpu.memory_space<smem>>
    %c1_63 = arith.constant 1 : index
    %c1_64 = arith.constant 1 : index
    %109 = vector.load %arg8[%c1_63, %c1_64] : memref<10x18xf32, #tpu.memory_space<vmem>>, vector<8x16xf32>
    %110 = vector.broadcast %108 : f32 to vector<8x16xf32>
    %111 = arith.mulf %110, %109 : vector<8x16xf32>
    %112 = arith.addf %107, %111 : vector<8x16xf32>
    %c13 = arith.constant 13 : index
    %113 = memref.load %arg6[%c13] : memref<18xf32, #tpu.memory_space<smem>>
    %c1_65 = arith.constant 1 : index
    %c1_66 = arith.constant 1 : index
    %114 = vector.load %arg9[%c1_65, %c1_66] : memref<10x18xf32, #tpu.memory_space<vmem>>, vector<8x16xf32>
    %115 = vector.broadcast %113 : f32 to vector<8x16xf32>
    %116 = arith.mulf %115, %114 : vector<8x16xf32>
    %117 = arith.addf %112, %116 : vector<8x16xf32>
    %c5 = arith.constant 5 : index
    %118 = memref.load %arg6[%c5] : memref<18xf32, #tpu.memory_space<smem>>
    %c1_67 = arith.constant 1 : index
    %c2_68 = arith.constant 2 : index
    %119 = vector.load %arg8[%c1_67, %c2_68] : memref<10x18xf32, #tpu.memory_space<vmem>>, vector<8x16xf32>
    %120 = vector.broadcast %118 : f32 to vector<8x16xf32>
    %121 = arith.mulf %120, %119 : vector<8x16xf32>
    %122 = arith.addf %117, %121 : vector<8x16xf32>
    %c14 = arith.constant 14 : index
    %123 = memref.load %arg6[%c14] : memref<18xf32, #tpu.memory_space<smem>>
    %c1_69 = arith.constant 1 : index
    %c2_70 = arith.constant 2 : index
    %124 = vector.load %arg9[%c1_69, %c2_70] : memref<10x18xf32, #tpu.memory_space<vmem>>, vector<8x16xf32>
    %125 = vector.broadcast %123 : f32 to vector<8x16xf32>
    %126 = arith.mulf %125, %124 : vector<8x16xf32>
    %127 = arith.addf %122, %126 : vector<8x16xf32>
    %c6 = arith.constant 6 : index
    %128 = memref.load %arg6[%c6] : memref<18xf32, #tpu.memory_space<smem>>
    %c2_71 = arith.constant 2 : index
    %c0_72 = arith.constant 0 : index
    %129 = vector.load %arg8[%c2_71, %c0_72] : memref<10x18xf32, #tpu.memory_space<vmem>>, vector<8x16xf32>
    %130 = vector.broadcast %128 : f32 to vector<8x16xf32>
    %131 = arith.mulf %130, %129 : vector<8x16xf32>
    %132 = arith.addf %127, %131 : vector<8x16xf32>
    %c15 = arith.constant 15 : index
    %133 = memref.load %arg6[%c15] : memref<18xf32, #tpu.memory_space<smem>>
    %c2_73 = arith.constant 2 : index
    %c0_74 = arith.constant 0 : index
    %134 = vector.load %arg9[%c2_73, %c0_74] : memref<10x18xf32, #tpu.memory_space<vmem>>, vector<8x16xf32>
    %135 = vector.broadcast %133 : f32 to vector<8x16xf32>
    %136 = arith.mulf %135, %134 : vector<8x16xf32>
    %137 = arith.addf %132, %136 : vector<8x16xf32>
    %c7 = arith.constant 7 : index
    %138 = memref.load %arg6[%c7] : memref<18xf32, #tpu.memory_space<smem>>
    %c2_75 = arith.constant 2 : index
    %c1_76 = arith.constant 1 : index
    %139 = vector.load %arg8[%c2_75, %c1_76] : memref<10x18xf32, #tpu.memory_space<vmem>>, vector<8x16xf32>
    %140 = vector.broadcast %138 : f32 to vector<8x16xf32>
    %141 = arith.mulf %140, %139 : vector<8x16xf32>
    %142 = arith.addf %137, %141 : vector<8x16xf32>
    %c16 = arith.constant 16 : index
    %143 = memref.load %arg6[%c16] : memref<18xf32, #tpu.memory_space<smem>>
    %c2_77 = arith.constant 2 : index
    %c1_78 = arith.constant 1 : index
    %144 = vector.load %arg9[%c2_77, %c1_78] : memref<10x18xf32, #tpu.memory_space<vmem>>, vector<8x16xf32>
    %145 = vector.broadcast %143 : f32 to vector<8x16xf32>
    %146 = arith.mulf %145, %144 : vector<8x16xf32>
    %147 = arith.addf %142, %146 : vector<8x16xf32>
    %c8 = arith.constant 8 : index
    %148 = memref.load %arg6[%c8] : memref<18xf32, #tpu.memory_space<smem>>
    %c2_79 = arith.constant 2 : index
    %c2_80 = arith.constant 2 : index
    %149 = vector.load %arg8[%c2_79, %c2_80] : memref<10x18xf32, #tpu.memory_space<vmem>>, vector<8x16xf32>
    %150 = vector.broadcast %148 : f32 to vector<8x16xf32>
    %151 = arith.mulf %150, %149 : vector<8x16xf32>
    %152 = arith.addf %147, %151 : vector<8x16xf32>
    %c17 = arith.constant 17 : index
    %153 = memref.load %arg6[%c17] : memref<18xf32, #tpu.memory_space<smem>>
    %c2_81 = arith.constant 2 : index
    %c2_82 = arith.constant 2 : index
    %154 = vector.load %arg9[%c2_81, %c2_82] : memref<10x18xf32, #tpu.memory_space<vmem>>, vector<8x16xf32>
    %155 = vector.broadcast %153 : f32 to vector<8x16xf32>
    %156 = arith.mulf %155, %154 : vector<8x16xf32>
    %157 = arith.addf %152, %156 : vector<8x16xf32>
    %cst_83 = arith.constant 0.000000e+00 : f32
    %158 = vector.broadcast %cst_83 : f32 to vector<8x16xf32>
    %159 = arith.subf %158, %157 : vector<8x16xf32>
    %160 = math.exp %159 : vector<8x16xf32>
    %cst_84 = arith.constant 1.000000e+00 : f32
    %161 = vector.broadcast %cst_84 : f32 to vector<8x16xf32>
    %162 = arith.addf %161, %160 : vector<8x16xf32>
    %163 = tpu.reciprocal %162 {approx = true} : vector<8x16xf32> -> vector<8x16xf32>
    %164 = vector.shape_cast %163 : vector<8x16xf32> to vector<8x16x1xf32>
    %165 = vector.broadcast %164 : vector<8x16x1xf32> to vector<8x16x256xf32>
    %166 = arith.mulf %7, %165 : vector<8x16x256xf32>
    %167 = arith.truncf %166 : vector<8x16x256xf32> to vector<8x16x256xbf16>
    %c0_85 = arith.constant 0 : index
    %c0_86 = arith.constant 0 : index
    %c0_87 = arith.constant 0 : index
    %c0_88 = arith.constant 0 : index
    %168 = vector.load %arg7[%c0_85, %c0_86, %c0_87, %c0_88] : memref<1x8x16x256xbf16, #tpu.memory_space<vmem>>, vector<1x8x16x256xbf16>
    %169 = vector.shape_cast %168 : vector<1x8x16x256xbf16> to vector<8x16x256xbf16>
    %170 = vector.shape_cast %167 : vector<8x16x256xbf16> to vector<1x8x16x256xbf16>
    tpu.vector_store %arg7[%c0_85, %c0_86, %c0_87, %c0_88], %170 {strides = array<i32>} : memref<1x8x16x256xbf16, #tpu.memory_space<vmem>>, vector<1x8x16x256xbf16>,
    return
  }
  func.func @transform_0(%arg0: i32, %arg1: i32) -> (i32, i32, i32, i32) {
    %c0_i32 = arith.constant 0 : i32
    %c0_i32_0 = arith.constant 0 : i32
    %c0_i32_1 = arith.constant 0 : i32
    return %arg0, %arg1, %c0_i32, %c0_i32_0 : i32, i32, i32, i32
  }
  func.func @transform_1(%arg0: i32, %arg1: i32) -> (i32, i32, i32, i32) {
    %c8_i32 = arith.constant 8 : i32
    %0 = arith.muli %arg1, %c8_i32 : i32
    %c1_i32 = arith.constant 1 : i32
    %1 = arith.subi %0, %c1_i32 : i32
    %c0_i32 = arith.constant 0 : i32
    %2 = arith.maxsi %1, %c0_i32 : i32
    %c0_i32_0 = arith.constant 0 : i32
    %c0_i32_1 = arith.constant 0 : i32
    %c0_i32_2 = arith.constant 0 : i32
    return %arg0, %2, %c0_i32_0, %c0_i32_1 : i32, i32, i32, i32
  }
  func.func @transform_2(%arg0: i32, %arg1: i32) -> (i32, i32, i32, i32) {
    %c8_i32 = arith.constant 8 : i32
    %0 = arith.muli %arg1, %c8_i32 : i32
    %c8_i32_0 = arith.constant 8 : i32
    %1 = arith.addi %0, %c8_i32_0 : i32
    %c19_i32 = arith.constant 19 : i32
    %2 = arith.minsi %1, %c19_i32 : i32
    %c0_i32 = arith.constant 0 : i32
    %c0_i32_1 = arith.constant 0 : i32
    %c0_i32_2 = arith.constant 0 : i32
    return %arg0, %2, %c0_i32, %c0_i32_1 : i32, i32, i32, i32
  }
  func.func @transform_3(%arg0: i32, %arg1: i32) -> (i32, i32, i32, i32) {
    %c0_i32 = arith.constant 0 : i32
    %c0_i32_0 = arith.constant 0 : i32
    %c0_i32_1 = arith.constant 0 : i32
    %c0_i32_2 = arith.constant 0 : i32
    return %arg0, %c0_i32, %c0_i32_0, %c0_i32_1 : i32, i32, i32, i32
  }
  func.func @transform_4(%arg0: i32, %arg1: i32) -> i32 {
    %c0_i32 = arith.constant 0 : i32
    %c0_i32_0 = arith.constant 0 : i32
    return %c0_i32 : i32
  }
  func.func @transform_5(%arg0: i32, %arg1: i32) -> (i32, i32, i32, i32) {
    %c0_i32 = arith.constant 0 : i32
    %c0_i32_0 = arith.constant 0 : i32
    %c0_i32_1 = arith.constant 0 : i32
    return %arg0, %arg1, %c0_i32, %c0_i32_0 : i32, i32, i32, i32
  }
}

</mosaic_0001>

<llo_original>
// kernel: _lambda_.2
$region0: #{_lambda_.2}
  #allocation0 [shape = 'u32[]', space=smem, size = 0x4, offset = 0x4, fixed_abs, tag = 'smem constant byte address 0x4 - core index']
  #allocation1 [shape = 'u32[144,128]{1,0:T(1,128)}', space=vmem, size = 0x12000, scoped, tag = 'internal scratch']
  %s0 = inlined_call_operand.vmem [shape: bf16[2,20,16,256], index: 0, kind: input, shape index: {}]
  %s1 = inlined_call_operand.vmem [shape: f32[6,1,256], index: 1, kind: output, shape index: {0}]
  %s2 = inlined_call_operand.vmem [shape: f32[6,1,256], index: 2, kind: output, shape index: {1}]
  %3 = xla_tuple %s1, %s2
  %s4 = sld [smem:[#allocation0]]
  $region45: #{_lambda_.2} parent=0
    _
  %s6 = ssub.s32 1, %s4
  %s7 = scalar_select 0, %s6, %s4
  loop: start=0, step=1, limit=8
  $region2: #{_lambda_.2} parent=0 // loop_pre_header
    _
  $region3: #{_lambda_.2} parent=0 // loop_header
    %s9 = sphi 0, %s13
    %p10 = scmp.ge.s32.totalorder %s9, 8
    %s16 = sphi 0, %s28
    %s17 = sphi 0, %s24
    %s18 = sphi 0, %s16
    %s19 = sphi 0, %s17
    %s20 = sphi 0, %s18
    %s21 = sphi 0, %s19
    %s33 = sphi 0, %s35
    %s36 = sphi 0, %s33
    %s37 = sphi 0, %s36
    %s53 = sphi 0, %s37
    %s63 = sphi 0, %s65
    %s66 = sphi 0, %s63
    %s67 = sphi 0, %s66
    %s83 = sphi 0, %s67
    %s93 = sphi 0, %s95
    %s96 = sphi 0, %s93
    %s97 = sphi 0, %s96
    %s113 = sphi 0, %s97
  $region4: #{_lambda_.2} parent=0 // loop_header_branch
    %12 = sbr.rel (%p10) target = $region8
  $region5: #{_lambda_.2} parent=0 // loop_body
    %s14 = ssub.s32 %s9, 1
    %s15 = ssub.s32 %s9, 2
    %s22 = sadd.s32 1, %s17
    %p23 = scmp.ge.s32.totalorder %s22, 3
    %s24 = scalar_select %p23, 0, %s22
    %s25 = sadd.s32 1, %s16
    %s26 = scalar_select %p23, %s25, %s16
    %p27 = scmp.ge.s32.totalorder %s26, 2
    %s28 = scalar_select %p27, 0, %s26
    %s29 = ssub.s32 %s16, %s28
    %s30 = ssub.s32 %s17, %s24
    %s31 = sor.u32 %s29, %s30
    %p32 = scmp.eq.s32.totalorder %s31, 0
    %s34 = sadd.s32 %s33, 1
    %s35 = scalar_select %p32, %s33, %s34
    %p38 = pneg %p32
    %p39 = scmp.eq.s32.totalorder %s9, 5
    %p40 = por %p38, %p39
    %p41 = scmp.ne.s32.totalorder %s33, %s36
    %p42 = scmp.eq.s32.totalorder %s9, 0
    %p43 = por %p41, %p42
    %p44 = scmp.ne.s32.totalorder %s33, %s36
    %p45 = scmp.eq.s32.totalorder %s14, 5
    %p46 = por %p44, %p45
    %p47 = scmp.ne.s32.totalorder %s36, %s37
    %p48 = scmp.eq.s32.totalorder %s14, 0
    %p49 = por %p47, %p48
    %p50 = scmp.ne.s32.totalorder %s36, %s37
    %p51 = scmp.eq.s32.totalorder %s15, 5
    %p52 = por %p50, %p51
    %p54 = scmp.ne.s32.totalorder %s37, %s53
    %p55 = scmp.eq.s32.totalorder %s15, 0
    %p56 = por %p54, %p55
    %s57 = smul.u32 %s16, 3
    %s58 = sadd.s32 %s57, %s17
    %s59 = smul.u32 %s28, 3
    %s60 = sadd.s32 %s59, %s24
    %s61 = ssub.s32 %s58, %s60
    %p62 = scmp.eq.s32.totalorder %s61, 0
    %s64 = sadd.s32 %s63, 1
    %s65 = scalar_select %p62, %s63, %s64
    %p68 = pneg %p62
    %p69 = scmp.eq.s32.totalorder %s9, 5
    %p70 = por %p68, %p69
    %p71 = scmp.ne.s32.totalorder %s63, %s66
    %p72 = scmp.eq.s32.totalorder %s9, 0
    %p73 = por %p71, %p72
    %p74 = scmp.ne.s32.totalorder %s63, %s66
    %p75 = scmp.eq.s32.totalorder %s14, 5
    %p76 = por %p74, %p75
    %p77 = scmp.ne.s32.totalorder %s66, %s67
    %p78 = scmp.eq.s32.totalorder %s14, 0
    %p79 = por %p77, %p78
    %p80 = scmp.ne.s32.totalorder %s66, %s67
    %p81 = scmp.eq.s32.totalorder %s15, 5
    %p82 = por %p80, %p81
    %p84 = scmp.ne.s32.totalorder %s67, %s83
    %p85 = scmp.eq.s32.totalorder %s15, 0
    %p86 = por %p84, %p85
    %s87 = smul.u32 %s16, 3
    %s88 = sadd.s32 %s87, %s17
    %s89 = smul.u32 %s28, 3
    %s90 = sadd.s32 %s89, %s24
    %s91 = ssub.s32 %s88, %s90
    %p92 = scmp.eq.s32.totalorder %s91, 0
    %s94 = sadd.s32 %s93, 1
    %s95 = scalar_select %p92, %s93, %s94
    %p98 = pneg %p92
    %p99 = scmp.eq.s32.totalorder %s9, 5
    %p100 = por %p98, %p99
    %p101 = scmp.ne.s32.totalorder %s93, %s96
    %p102 = scmp.eq.s32.totalorder %s9, 0
    %p103 = por %p101, %p102
    %p104 = scmp.ne.s32.totalorder %s93, %s96
    %p105 = scmp.eq.s32.totalorder %s14, 5
    %p106 = por %p104, %p105
    %p107 = scmp.ne.s32.totalorder %s96, %s97
    %p108 = scmp.eq.s32.totalorder %s14, 0
    %p109 = por %p107, %p108
    %p110 = scmp.ne.s32.totalorder %s96, %s97
    %p111 = scmp.eq.s32.totalorder %s15, 5
    %p112 = por %p110, %p111
    %p114 = scmp.ne.s32.totalorder %s97, %s113
    %p115 = scmp.eq.s32.totalorder %s15, 0
    %p116 = por %p114, %p115
    %p117 = scmp.le.s32.totalorder 1, %s9
    %p118 = scmp.lt.s32.totalorder %s9, 7
    %p119 = pnand %p117, %p118
    %p120 = pneg %p119
    // Predicated region
    $region9: #{_lambda_.2} parent=5 // pred_check
      _
    $region10: #{_lambda_.2} parent=5 // pred_check_branch
      %122 = sbr.rel (%p119) target = $region12
    $region11: #{_lambda_.2} parent=5 // pred_region
      %s123 = ssub.s32 %s9, 1
    $region12: #{_lambda_.2} parent=5 // pred_fallthru
      _
    %p124 = scmp.lt.s32.totalorder %s9, 6
    // Predicated region
    $region13: #{_lambda_.2} parent=5 // pred_check
      %p125 = pneg %p124
    $region14: #{_lambda_.2} parent=5 // pred_check_branch
      %127 = sbr.rel (%p125) target = $region16
    $region15: #{_lambda_.2} parent=5 // pred_region
      // Predicated region
      $region17: #{_lambda_.2} parent=15 // pred_check
        %p128 = pneg %p43
      $region18: #{_lambda_.2} parent=15 // pred_check_branch
        %130 = sbr.rel (%p128) target = $region20
      $region19: #{_lambda_.2} parent=15 // pred_region
        %s131 = smul.u32 8, %s17
        %s132 = ssub.s32 20, %s131
        %p133 = scmp.lt.s32.totalorder %s132, 8
        %s134 = scalar_select %p133, %s132, 8
        %s135 = smul.u32 64, %s134
        %s136 = smul.u32 %s135, 2
        %s137 = smul.u32 %s136, 2
        %p138 = scmp.lt.s32.totalorder %s16, 1
        %s139 = scalar_select %p138, %s16, 1
        %p140 = scmp.lt.s32.totalorder %s131, 19
        %s141 = scalar_select %p140, %s131, 19
        %s142 = smul.addr %s141, 4
        %s143 = smul.addr %s139, 80
        %s144 = sadd.s32 %s142, %s143
        %s145 = smul.addr %s144, 4
        %s146 = scalar_lea.vmem %s0, %s145
        %s147 = smul.u32 8, %s17
        %s148 = ssub.s32 20, %s147
        %p149 = scmp.lt.s32.totalorder %s148, 8
        %s150 = scalar_select %p149, %s148, 8
        %s151 = smul.u32 64, %s150
        %s152 = smul.u32 %s151, 2
        %s153 = smul.u32 %s152, 2
      $region20: #{_lambda_.2} parent=15 // pred_fallthru
        _
    $region16: #{_lambda_.2} parent=5 // pred_fallthru
      _
    %p154 = scmp.le.s32.totalorder 1, %s9
    %p155 = scmp.lt.s32.totalorder %s9, 7
    %p156 = pnand %p154, %p155
    %p157 = pneg %p156
    // Predicated region
    $region21: #{_lambda_.2} parent=5 // pred_check
      _
    $region22: #{_lambda_.2} parent=5 // pred_check_branch
      %159 = sbr.rel (%p156) target = $region24
    $region23: #{_lambda_.2} parent=5 // pred_region
      %s160 = ssub.s32 %s9, 1
      %s161 = smul.u32 8, %s19
      %s162 = ssub.s32 20, %s161
      %p163 = scmp.lt.s32.totalorder %s162, 8
      %s164 = scalar_select %p163, %s162, 8
      %s165 = smul.u32 64, %s164
      %s166 = smul.u32 %s165, 2
      %s167 = smul.u32 %s166, 2
      %p168 = scmp.lt.s32.totalorder %s18, 1
      %s169 = scalar_select %p168, %s18, 1
      %p170 = scmp.lt.s32.totalorder %s161, 19
      %s171 = scalar_select %p170, %s161, 19
      %s172 = smul.addr %s171, 4
      %s173 = smul.addr %s169, 80
      %s174 = sadd.s32 %s172, %s173
      %s175 = smul.addr %s174, 4
      %s176 = scalar_lea.vmem %s0, %s175
      %p177 = pneg %p49
      %p178 = pneg %p46
      %p179 = pneg %p79
      %p180 = pneg %p76
      %s181 = smul.u32 %s18, 3
      %s182 = sadd.s32 %s181, %s19
      %p183 = scmp.lt.s32.totalorder %s182, 5
      %s184 = scalar_select %p183, %s182, 5
      %s185 = smul.addr %s184, 2
      %s186 = scalar_lea.vmem %s1, %s185
      %p187 = pneg %p109
      %p188 = pneg %p106
      %s189 = smul.u32 %s18, 3
      %s190 = sadd.s32 %s189, %s19
      %p191 = scmp.lt.s32.totalorder %s190, 5
      %s192 = scalar_select %p191, %s190, 5
      %s193 = smul.addr %s192, 2
      %s194 = scalar_lea.vmem %s2, %s193
      %s195 = smul.u32 8, %s19
      %s196 = ssub.s32 20, %s195
      %p197 = scmp.lt.s32.totalorder %s196, 8
      %s198 = scalar_select %p197, %s196, 8
      %s199 = smul.u32 64, %s198
      %s200 = smul.u32 %s199, 2
      %s201 = smul.u32 %s200, 2
      %p202 = scmp.lt.s32.totalorder %s18, 1
      %s203 = scalar_select %p202, %s18, 1
      %p204 = scmp.lt.s32.totalorder %s195, 19
      %s205 = scalar_select %p204, %s195, 19
      %s206 = smul.addr %s205, 4
      %s207 = smul.addr %s203, 80
      %s208 = sadd.s32 %s206, %s207
      %s209 = smul.addr %s208, 4
      %s210 = scalar_lea.vmem %s0, %s209
      %s211 = smul.u32 8, %s19
      %s212 = ssub.s32 20, %s211
      %p213 = scmp.lt.s32.totalorder %s212, 8
      %s214 = scalar_select %p213, %s212, 8
      %s215 = smul.u32 64, %s214
      %s216 = smul.u32 %s215, 2
      %s217 = smul.u32 %s216, 2
      %s218 = smul.u32 %s18, 3
      %s219 = sadd.s32 %s218, %s19
      %p220 = scmp.lt.s32.totalorder %s219, 5
      %s221 = scalar_select %p220, %s219, 5
      %s222 = smul.addr %s221, 2
      %s223 = scalar_lea.vmem %s1, %s222
      %s224 = smul.u32 %s18, 3
      %s225 = sadd.s32 %s224, %s19
      %s226 = smul.u32 %s18, 3
      %s227 = sadd.s32 %s226, %s19
      %p228 = scmp.lt.s32.totalorder %s227, 5
      %s229 = scalar_select %p228, %s227, 5
      %s230 = smul.addr %s229, 2
      %s231 = scalar_lea.vmem %s2, %s230
      %s232 = smul.u32 %s18, 3
      %s233 = sadd.s32 %s232, %s19
      %v234 = vld [vmem:[%s210] sm:$0xff]
      %v235 = vld [vmem:[%s210 + $0x8] sm:$0xff]
      %v236 = vld [vmem:[%s210 + $0x10] sm:$0xff]
      %v237 = vld [vmem:[%s210 + $0x18] sm:$0xff]
      %v238 = vld [vmem:[%s210 + $0x20] sm:$0xff]
      %v239 = vld [vmem:[%s210 + $0x28] sm:$0xff]
      %v240 = vld [vmem:[%s210 + $0x30] sm:$0xff]
      %v241 = vld [vmem:[%s210 + $0x38] sm:$0xff]
      %v242 = vld [vmem:[%s210 + $0x40] sm:$0xff]
      %v243 = vld [vmem:[%s210 + $0x48] sm:$0xff]
      %v244 = vld [vmem:[%s210 + $0x50] sm:$0xff]
      %v245 = vld [vmem:[%s210 + $0x58] sm:$0xff]
      %v246 = vld [vmem:[%s210 + $0x60] sm:$0xff]
      %v247 = vld [vmem:[%s210 + $0x68] sm:$0xff]
      %v248 = vld [vmem:[%s210 + $0x70] sm:$0xff]
      %v249 = vld [vmem:[%s210 + $0x78] sm:$0xff]
      %v250 = vunpack.c.l.bf16 %v234
      %v251 = vunpack.c.h.bf16 %v234
      %v252 = vunpack.c.l.bf16 %v235
      %v253 = vunpack.c.h.bf16 %v235
      %v254 = vunpack.c.l.bf16 %v236
      %v255 = vunpack.c.h.bf16 %v236
      %v256 = vunpack.c.l.bf16 %v237
      %v257 = vunpack.c.h.bf16 %v237
      %v258 = vunpack.c.l.bf16 %v238
      %v259 = vunpack.c.h.bf16 %v238
      %v260 = vunpack.c.l.bf16 %v239
      %v261 = vunpack.c.h.bf16 %v239
      %v262 = vunpack.c.l.bf16 %v240
      %v263 = vunpack.c.h.bf16 %v240
      %v264 = vunpack.c.l.bf16 %v241
      %v265 = vunpack.c.h.bf16 %v241
      %v266 = vunpack.c.l.bf16 %v242
      %v267 = vunpack.c.h.bf16 %v242
      %v268 = vunpack.c.l.bf16 %v243
      %v269 = vunpack.c.h.bf16 %v243
      %v270 = vunpack.c.l.bf16 %v244
      %v271 = vunpack.c.h.bf16 %v244
      %v272 = vunpack.c.l.bf16 %v245
      %v273 = vunpack.c.h.bf16 %v245
      %v274 = vunpack.c.l.bf16 %v246
      %v275 = vunpack.c.h.bf16 %v246
      %v276 = vunpack.c.l.bf16 %v247
      %v277 = vunpack.c.h.bf16 %v247
      %v278 = vunpack.c.l.bf16 %v248
      %v279 = vunpack.c.h.bf16 %v248
      %v280 = vunpack.c.l.bf16 %v249
      %v281 = vunpack.c.h.bf16 %v249
      %v282 = vadd.f32 %v250, %v252
      %v283 = vrot.slane %v282, 4
      %v284 = vadd.f32 %v282, %v283
      %v285 = vrot.slane %v284, 2
      %v286 = vadd.f32 %v284, %v285
      %v287 = vrot.slane %v286, 1
      %v288 = vadd.f32 %v286, %v287
      %v289 = vadd.f32 %v251, %v253
      %v290 = vrot.slane %v289, 4
      %v291 = vadd.f32 %v289, %v290
      %v292 = vrot.slane %v291, 2
      %v293 = vadd.f32 %v291, %v292
      %v294 = vrot.slane %v293, 1
      %v295 = vadd.f32 %v293, %v294
      %v296 = vadd.f32 %v254, %v256
      %v297 = vrot.slane %v296, 4
      %v298 = vadd.f32 %v296, %v297
      %v299 = vrot.slane %v298, 2
      %v300 = vadd.f32 %v298, %v299
      %v301 = vrot.slane %v300, 1
      %v302 = vadd.f32 %v300, %v301
      %v303 = vadd.f32 %v255, %v257
      %v304 = vrot.slane %v303, 4
      %v305 = vadd.f32 %v303, %v304
      %v306 = vrot.slane %v305, 2
      %v307 = vadd.f32 %v305, %v306
      %v308 = vrot.slane %v307, 1
      %v309 = vadd.f32 %v307, %v308
      %v310 = vadd.f32 %v258, %v260
      %v311 = vrot.slane %v310, 4
      %v312 = vadd.f32 %v310, %v311
      %v313 = vrot.slane %v312, 2
      %v314 = vadd.f32 %v312, %v313
      %v315 = vrot.slane %v314, 1
      %v316 = vadd.f32 %v314, %v315
      %v317 = vadd.f32 %v259, %v261
      %v318 = vrot.slane %v317, 4
      %v319 = vadd.f32 %v317, %v318
      %v320 = vrot.slane %v319, 2
      %v321 = vadd.f32 %v319, %v320
      %v322 = vrot.slane %v321, 1
      %v323 = vadd.f32 %v321, %v322
      %v324 = vadd.f32 %v262, %v264
      %v325 = vrot.slane %v324, 4
      %v326 = vadd.f32 %v324, %v325
      %v327 = vrot.slane %v326, 2
      %v328 = vadd.f32 %v326, %v327
      %v329 = vrot.slane %v328, 1
      %v330 = vadd.f32 %v328, %v329
      %v331 = vadd.f32 %v263, %v265
      %v332 = vrot.slane %v331, 4
      %v333 = vadd.f32 %v331, %v332
      %v334 = vrot.slane %v333, 2
      %v335 = vadd.f32 %v333, %v334
      %v336 = vrot.slane %v335, 1
      %v337 = vadd.f32 %v335, %v336
      %v338 = vadd.f32 %v266, %v268
      %v339 = vrot.slane %v338, 4
      %v340 = vadd.f32 %v338, %v339
      %v341 = vrot.slane %v340, 2
      %v342 = vadd.f32 %v340, %v341
      %v343 = vrot.slane %v342, 1
      %v344 = vadd.f32 %v342, %v343
      %v345 = vadd.f32 %v267, %v269
      %v346 = vrot.slane %v345, 4
      %v347 = vadd.f32 %v345, %v346
      %v348 = vrot.slane %v347, 2
      %v349 = vadd.f32 %v347, %v348
      %v350 = vrot.slane %v349, 1
      %v351 = vadd.f32 %v349, %v350
      %v352 = vadd.f32 %v270, %v272
      %v353 = vrot.slane %v352, 4
      %v354 = vadd.f32 %v352, %v353
      %v355 = vrot.slane %v354, 2
      %v356 = vadd.f32 %v354, %v355
      %v357 = vrot.slane %v356, 1
      %v358 = vadd.f32 %v356, %v357
      %v359 = vadd.f32 %v271, %v273
      %v360 = vrot.slane %v359, 4
      %v361 = vadd.f32 %v359, %v360
      %v362 = vrot.slane %v361, 2
      %v363 = vadd.f32 %v361, %v362
      %v364 = vrot.slane %v363, 1
      %v365 = vadd.f32 %v363, %v364
      %v366 = vadd.f32 %v274, %v276
      %v367 = vrot.slane %v366, 4
      %v368 = vadd.f32 %v366, %v367
      %v369 = vrot.slane %v368, 2
      %v370 = vadd.f32 %v368, %v369
      %v371 = vrot.slane %v370, 1
      %v372 = vadd.f32 %v370, %v371
      %v373 = vadd.f32 %v275, %v277
      %v374 = vrot.slane %v373, 4
      %v375 = vadd.f32 %v373, %v374
      %v376 = vrot.slane %v375, 2
      %v377 = vadd.f32 %v375, %v376
      %v378 = vrot.slane %v377, 1
      %v379 = vadd.f32 %v377, %v378
      %v380 = vadd.f32 %v278, %v280
      %v381 = vrot.slane %v380, 4
      %v382 = vadd.f32 %v380, %v381
      %v383 = vrot.slane %v382, 2
      %v384 = vadd.f32 %v382, %v383
      %v385 = vrot.slane %v384, 1
      %v386 = vadd.f32 %v384, %v385
      %v387 = vadd.f32 %v279, %v281
      %v388 = vrot.slane %v387, 4
      %v389 = vadd.f32 %v387, %v388
      %v390 = vrot.slane %v389, 2
      %v391 = vadd.f32 %v389, %v390
      %v392 = vrot.slane %v391, 1
      %v393 = vadd.f32 %v391, %v392
      %v394 = vmax.f32 %v250, %v252
      %v395 = vrot.slane %v394, 4
      %v396 = vmax.f32 %v394, %v395
      %v397 = vrot.slane %v396, 2
      %v398 = vmax.f32 %v396, %v397
      %v399 = vrot.slane %v398, 1
      %v400 = vmax.f32 %v398, %v399
      %v401 = vmax.f32 %v251, %v253
      %v402 = vrot.slane %v401, 4
      %v403 = vmax.f32 %v401, %v402
      %v404 = vrot.slane %v403, 2
      %v405 = vmax.f32 %v403, %v404
      %v406 = vrot.slane %v405, 1
      %v407 = vmax.f32 %v405, %v406
      %v408 = vmax.f32 %v254, %v256
      %v409 = vrot.slane %v408, 4
      %v410 = vmax.f32 %v408, %v409
      %v411 = vrot.slane %v410, 2
      %v412 = vmax.f32 %v410, %v411
      %v413 = vrot.slane %v412, 1
      %v414 = vmax.f32 %v412, %v413
      %v415 = vmax.f32 %v255, %v257
      %v416 = vrot.slane %v415, 4
      %v417 = vmax.f32 %v415, %v416
      %v418 = vrot.slane %v417, 2
      %v419 = vmax.f32 %v417, %v418
      %v420 = vrot.slane %v419, 1
      %v421 = vmax.f32 %v419, %v420
      %v422 = vmax.f32 %v258, %v260
      %v423 = vrot.slane %v422, 4
      %v424 = vmax.f32 %v422, %v423
      %v425 = vrot.slane %v424, 2
      %v426 = vmax.f32 %v424, %v425
      %v427 = vrot.slane %v426, 1
      %v428 = vmax.f32 %v426, %v427
      %v429 = vmax.f32 %v259, %v261
      %v430 = vrot.slane %v429, 4
      %v431 = vmax.f32 %v429, %v430
      %v432 = vrot.slane %v431, 2
      %v433 = vmax.f32 %v431, %v432
      %v434 = vrot.slane %v433, 1
      %v435 = vmax.f32 %v433, %v434
      %v436 = vmax.f32 %v262, %v264
      %v437 = vrot.slane %v436, 4
      %v438 = vmax.f32 %v436, %v437
      %v439 = vrot.slane %v438, 2
      %v440 = vmax.f32 %v438, %v439
      %v441 = vrot.slane %v440, 1
      %v442 = vmax.f32 %v440, %v441
      %v443 = vmax.f32 %v263, %v265
      %v444 = vrot.slane %v443, 4
      %v445 = vmax.f32 %v443, %v444
      %v446 = vrot.slane %v445, 2
      %v447 = vmax.f32 %v445, %v446
      %v448 = vrot.slane %v447, 1
      %v449 = vmax.f32 %v447, %v448
      %v450 = vmax.f32 %v266, %v268
      %v451 = vrot.slane %v450, 4
      %v452 = vmax.f32 %v450, %v451
      %v453 = vrot.slane %v452, 2
      %v454 = vmax.f32 %v452, %v453
      %v455 = vrot.slane %v454, 1
      %v456 = vmax.f32 %v454, %v455
      %v457 = vmax.f32 %v267, %v269
      %v458 = vrot.slane %v457, 4
      %v459 = vmax.f32 %v457, %v458
      %v460 = vrot.slane %v459, 2
      %v461 = vmax.f32 %v459, %v460
      %v462 = vrot.slane %v461, 1
      %v463 = vmax.f32 %v461, %v462
      %v464 = vmax.f32 %v270, %v272
      %v465 = vrot.slane %v464, 4
      %v466 = vmax.f32 %v464, %v465
      %v467 = vrot.slane %v466, 2
      %v468 = vmax.f32 %v466, %v467
      %v469 = vrot.slane %v468, 1
      %v470 = vmax.f32 %v468, %v469
      %v471 = vmax.f32 %v271, %v273
      %v472 = vrot.slane %v471, 4
      %v473 = vmax.f32 %v471, %v472
      %v474 = vrot.slane %v473, 2
      %v475 = vmax.f32 %v473, %v474
      %v476 = vrot.slane %v475, 1
      %v477 = vmax.f32 %v475, %v476
      %v478 = vmax.f32 %v274, %v276
      %v479 = vrot.slane %v478, 4
      %v480 = vmax.f32 %v478, %v479
      %v481 = vrot.slane %v480, 2
      %v482 = vmax.f32 %v480, %v481
      %v483 = vrot.slane %v482, 1
      %v484 = vmax.f32 %v482, %v483
      %v485 = vmax.f32 %v275, %v277
      %v486 = vrot.slane %v485, 4
      %v487 = vmax.f32 %v485, %v486
      %v488 = vrot.slane %v487, 2
      %v489 = vmax.f32 %v487, %v488
      %v490 = vrot.slane %v489, 1
      %v491 = vmax.f32 %v489, %v490
      %v492 = vmax.f32 %v278, %v280
      %v493 = vrot.slane %v492, 4
      %v494 = vmax.f32 %v492, %v493
      %v495 = vrot.slane %v494, 2
      %v496 = vmax.f32 %v494, %v495
      %v497 = vrot.slane %v496, 1
      %v498 = vmax.f32 %v496, %v497
      %v499 = vmax.f32 %v279, %v281
      %v500 = vrot.slane %v499, 4
      %v501 = vmax.f32 %v499, %v500
      %v502 = vrot.slane %v501, 2
      %v503 = vmax.f32 %v501, %v502
      %v504 = vrot.slane %v503, 1
      %v505 = vmax.f32 %v503, %v504
      %s506 = smul.u32 %s19, 8
      %v507 = vlaneseq
      %v508 = vshrl.u32 %v507, 7
      %v509 = vstv %s506
      %v510 = vadd.s32 %v509, %v508
      %vm511 = vcmp.lt.s32.totalorder %v510, 20
      %vm528 = vcmask 1041409
      %v529 = vsel %vm528, %v302, %v288
      %vm530 = vcmask 1042434
      %v531 = vsel %vm530, %v316, %v529
      %vm532 = vcmask 1043459
      %v533 = vsel %vm532, %v330, %v531
      %vm534 = vcmask 1044484
      %v535 = vsel %vm534, %v344, %v533
      %vm536 = vcmask 1045509
      %v537 = vsel %vm536, %v358, %v535
      %vm538 = vcmask 1046534
      %v539 = vsel %vm538, %v372, %v537
      %vm540 = vcmask 1047559
      %v541 = vsel %vm540, %v386, %v539
      %v542 = vsel %vm528, %v309, %v295
      %v543 = vsel %vm530, %v323, %v542
      %v544 = vsel %vm532, %v337, %v543
      %v545 = vsel %vm534, %v351, %v544
      %v546 = vsel %vm536, %v365, %v545
      %v547 = vsel %vm538, %v379, %v546
      %v548 = vsel %vm540, %v393, %v547
      %v551 = vsel %vm511, %v541, 0.0
      %v552 = vsel %vm511, %v548, 0.0
      %v569 = vsel %vm528, %v414, %v400
      %v570 = vsel %vm530, %v428, %v569
      %v571 = vsel %vm532, %v442, %v570
      %v572 = vsel %vm534, %v456, %v571
      %v573 = vsel %vm536, %v470, %v572
      %v574 = vsel %vm538, %v484, %v573
      %v575 = vsel %vm540, %v498, %v574
      %v576 = vsel %vm528, %v421, %v407
      %v577 = vsel %vm530, %v435, %v576
      %v578 = vsel %vm532, %v449, %v577
      %v579 = vsel %vm534, %v463, %v578
      %v580 = vsel %vm536, %v477, %v579
      %v581 = vsel %vm538, %v491, %v580
      %v582 = vsel %vm540, %v505, %v581
      %v585 = vsel %vm511, %v575, -inf
      %v586 = vsel %vm511, %v582, -inf
      %v587 = vrot.slane %v551, 4
      %v588 = vadd.f32 %v551, %v587
      %v589 = vrot.slane %v588, 2
      %v590 = vadd.f32 %v588, %v589
      %v591 = vrot.slane %v590, 1
      %v592 = vadd.f32 %v590, %v591
      %v593 = vrot.slane %v552, 4
      %v594 = vadd.f32 %v552, %v593
      %v595 = vrot.slane %v594, 2
      %v596 = vadd.f32 %v594, %v595
      %v597 = vrot.slane %v596, 1
      %v598 = vadd.f32 %v596, %v597
      %v601 = vcombine.low %v592, %v598
      %v603 = vunpack.c.l.s4 1966171168
      %v604 = vunpack.c.0.s8 %v603
      %v605 = vlaneseq
      %v606 = vshrl.u32 %v605, 7
      %v607 = vsub.s32 %v604, %v606
      %v608 = vrot.slane %v601, %v607
      %v610 = vunpack.c.l.s4 1966171168
      %v611 = vunpack.c.0.s8 %v610
      %v612 = vlaneseq
      %v613 = vshrl.u32 %v612, 7
      %v614 = vsub.s32 %v611, %v613
      %v615 = vrot.slane %v608, %v614
      %v617 = vlaneseq
      %vm618 = vcmp.ge.s32.totalorder %v617, 0
      %vm619 = vcmp.lt.s32.totalorder %v617, 256
      %vm620 = vmand %vm618, %vm619
      %621 = vst.msk [vmem:[%s223] sm:$0x3] %vm620, %v615
      %v622 = vrot.slane %v585, 4
      %v623 = vmax.f32 %v585, %v622
      %v624 = vrot.slane %v623, 2
      %v625 = vmax.f32 %v623, %v624
      %v626 = vrot.slane %v625, 1
      %v627 = vmax.f32 %v625, %v626
      %v628 = vrot.slane %v586, 4
      %v629 = vmax.f32 %v586, %v628
      %v630 = vrot.slane %v629, 2
      %v631 = vmax.f32 %v629, %v630
      %v632 = vrot.slane %v631, 1
      %v633 = vmax.f32 %v631, %v632
      %v636 = vcombine.low %v627, %v633
      %v638 = vunpack.c.l.s4 1966171168
      %v639 = vunpack.c.0.s8 %v638
      %v640 = vlaneseq
      %v641 = vshrl.u32 %v640, 7
      %v642 = vsub.s32 %v639, %v641
      %v643 = vrot.slane %v636, %v642
      %v645 = vunpack.c.l.s4 1966171168
      %v646 = vunpack.c.0.s8 %v645
      %v647 = vlaneseq
      %v648 = vshrl.u32 %v647, 7
      %v649 = vsub.s32 %v646, %v648
      %v650 = vrot.slane %v643, %v649
      %652 = vst.msk [vmem:[%s231] sm:$0x3] %vm620, %v650
      %s653 = smul.u32 %s18, 3
      %s654 = sadd.s32 %s653, %s19
      %p655 = scmp.lt.s32.totalorder %s654, 5
      %s656 = scalar_select %p655, %s654, 5
      %s657 = smul.addr %s656, 2
      %s658 = scalar_lea.vmem %s1, %s657
      %s659 = smul.u32 %s18, 3
      %s660 = sadd.s32 %s659, %s19
      %p661 = scmp.lt.s32.totalorder %s660, 5
      %s662 = scalar_select %p661, %s660, 5
      %s663 = smul.addr %s662, 2
      %s664 = scalar_lea.vmem %s2, %s663
      // Predicated region
      $region25: #{_lambda_.2} parent=23 // pred_check
        %p665 = pneg %p76
      $region26: #{_lambda_.2} parent=23 // pred_check_branch
        %667 = sbr.rel (%p665) target = $region28
      $region27: #{_lambda_.2} parent=23 // pred_region
        %s668 = smul.u32 %s18, 3
        %s669 = sadd.s32 %s668, %s19
      $region28: #{_lambda_.2} parent=23 // pred_fallthru
        _
      // Predicated region
      $region29: #{_lambda_.2} parent=23 // pred_check
        %p670 = pneg %p106
      $region30: #{_lambda_.2} parent=23 // pred_check_branch
        %672 = sbr.rel (%p670) target = $region32
      $region31: #{_lambda_.2} parent=23 // pred_region
        %s673 = smul.u32 %s18, 3
        %s674 = sadd.s32 %s673, %s19
      $region32: #{_lambda_.2} parent=23 // pred_fallthru
        _
    $region24: #{_lambda_.2} parent=5 // pred_fallthru
      _
    %p675 = scmp.le.s32.totalorder 2, %s9
    // Predicated region
    $region33: #{_lambda_.2} parent=5 // pred_check
      %p676 = pneg %p675
    $region34: #{_lambda_.2} parent=5 // pred_check_branch
      %678 = sbr.rel (%p676) target = $region36
    $region35: #{_lambda_.2} parent=5 // pred_region
      %s679 = ssub.s32 %s9, 2
      // Predicated region
      $region37: #{_lambda_.2} parent=35 // pred_check
        %p680 = pneg %p82
      $region38: #{_lambda_.2} parent=35 // pred_check_branch
        %682 = sbr.rel (%p680) target = $region40
      $region39: #{_lambda_.2} parent=35 // pred_region
        %s683 = smul.u32 %s20, 3
        %s684 = sadd.s32 %s683, %s21
        %p685 = scmp.lt.s32.totalorder %s684, 5
        %s686 = scalar_select %p685, %s684, 5
        %s687 = smul.addr %s686, 2
        %s688 = scalar_lea.vmem %s1, %s687
      $region40: #{_lambda_.2} parent=35 // pred_fallthru
        _
      // Predicated region
      $region41: #{_lambda_.2} parent=35 // pred_check
        %p689 = pneg %p112
      $region42: #{_lambda_.2} parent=35 // pred_check_branch
        %691 = sbr.rel (%p689) target = $region44
      $region43: #{_lambda_.2} parent=35 // pred_region
        %s692 = smul.u32 %s20, 3
        %s693 = sadd.s32 %s692, %s21
        %p694 = scmp.lt.s32.totalorder %s693, 5
        %s695 = scalar_select %p694, %s693, 5
        %s696 = smul.addr %s695, 2
        %s697 = scalar_lea.vmem %s2, %s696
      $region44: #{_lambda_.2} parent=35 // pred_fallthru
        _
    $region36: #{_lambda_.2} parent=5 // pred_fallthru
      _
  $region6: #{_lambda_.2} parent=0 // loop_footer
    %s13 = sadd.s32 1, %s9
  $region7: #{_lambda_.2} parent=0 // loop_footer_branch
    %8 = sbr.rel target = $region3
  $region8: #{_lambda_.2} parent=0 // loop_exit
    _

// kernel: _lambda_.3
$region0: #{_lambda_.3}
  #allocation0 [shape = 'u32[]', space=smem, size = 0x4, offset = 0x4, fixed_abs, tag = 'smem constant byte address 0x4 - core index']
  #allocation1 [shape = 'u32[144,128]{1,0:T(1,128)}', space=vmem, size = 0x12000, scoped, tag = 'internal scratch']
  #allocation2 [shape = 'f32[10,18]{1,0:T(8,128)}', space=vmem, size = 0x2000, scoped, tag = 'scratch operand']
  #allocation3 [shape = 'f32[10,18]{1,0:T(8,128)}', space=vmem, size = 0x2000, scoped, tag = 'scratch operand']
  %s0 = inlined_call_operand.vmem [shape: bf16[2,20,16,256], index: 0, kind: input, shape index: {}, may-alias: {0,1,2}]
  %s1 = inlined_call_operand.vmem [shape: bf16[2,20,16,256], index: 1, kind: input, shape index: {}, may-alias: {0,1,2}]
  %s2 = inlined_call_operand.vmem [shape: bf16[2,20,16,256], index: 2, kind: input, shape index: {}, may-alias: {0,1,2}]
  %s3 = inlined_call_operand.vmem [shape: f32[2,1,1,256], index: 3, kind: input, shape index: {}]
  %s4 = inlined_call_operand.vmem [shape: f32[18], index: 4, kind: input, shape index: {}]
  %s5 = inlined_call_operand.hbm [shape: bf16[2,20,16,256], index: 5, kind: output, shape index: {}]
  %s6 = sld [smem:[#allocation0]]
  $region57: #{_lambda_.3} parent=0
    _
  %s8 = ssub.s32 1, %s6
  %s9 = scalar_select 0, %s8, %s6
  $region1: #{_lambda_.3} parent=0
    #allocation4 [shape = 'u8[512]{0}', space=smem, size = 0x200, scoped, tag = 'input window, operand 4, single buffered']
    #allocation5 [shape = 's32[2]{0}', space=sflag, size = 0x8, scoped, tag = 'scoped memory for _lambda_.3']
    #allocation6 [shape = 's32[2]{0}', space=sflag, size = 0x8, scoped, tag = 'scoped memory for _lambda_.3']
    #allocation7 [shape = 'u8[131072]{0}', space=vmem, size = 0x20000, scoped, tag = 'output window, operand 0']
    %10 = vsyncpa [#allocation6], 0
    %11 = vsyncpa [#allocation5], 0
    %s12 = scalar_lea.sflag [#allocation5], 1
    %13 = vsyncpa %s12, 0
    loop: start=0, step=1, limit=8
    $region2: #{_lambda_.3} parent=1 // loop_pre_header
      _
    $region3: #{_lambda_.3} parent=1 // loop_header
      %s15 = sphi 0, %s19
      %p16 = scmp.ge.s32.totalorder %s15, 8
      %s22 = sphi 0, %s34
      %s23 = sphi 0, %s30
      %s24 = sphi 0, %s22
      %s25 = sphi 0, %s23
      %s26 = sphi 0, %s24
      %s27 = sphi 0, %s25
      %s39 = sphi 0, %s41
      %s42 = sphi 0, %s39
      %s43 = sphi 0, %s42
      %s59 = sphi 0, %s43
      %s75 = sphi 0, %s77
      %s78 = sphi 0, %s75
      %s79 = sphi 0, %s78
      %s95 = sphi 0, %s79
      %s111 = sphi 0, %s113
      %s114 = sphi 0, %s111
      %s115 = sphi 0, %s114
      %s131 = sphi 0, %s115
      %s137 = sphi 0, %s139
      %s140 = sphi 0, %s137
      %s141 = sphi 0, %s140
      %s157 = sphi 0, %s141
      %s161 = sphi 0, %s161
      %s163 = sphi 0, %s161
      %s164 = sphi 0, %s163
      %s178 = sphi 0, %s164
      %s186 = sphi 0, %s188
      %s189 = sphi 0, %s186
      %s190 = sphi 0, %s189
      %s206 = sphi 0, %s190
    $region4: #{_lambda_.3} parent=1 // loop_header_branch
      %18 = sbr.rel (%p16) target = $region8
    $region5: #{_lambda_.3} parent=1 // loop_body
      %s20 = ssub.s32 %s15, 1
      %s21 = ssub.s32 %s15, 2
      %s28 = sadd.s32 1, %s23
      %p29 = scmp.ge.s32.totalorder %s28, 3
      %s30 = scalar_select %p29, 0, %s28
      %s31 = sadd.s32 1, %s22
      %s32 = scalar_select %p29, %s31, %s22
      %p33 = scmp.ge.s32.totalorder %s32, 2
      %s34 = scalar_select %p33, 0, %s32
      %s35 = ssub.s32 %s22, %s34
      %s36 = ssub.s32 %s23, %s30
      %s37 = sor.u32 %s35, %s36
      %p38 = scmp.eq.s32.totalorder %s37, 0
      %s40 = sadd.s32 %s39, 1
      %s41 = scalar_select %p38, %s39, %s40
      %p44 = pneg %p38
      %p45 = scmp.eq.s32.totalorder %s15, 5
      %p46 = por %p44, %p45
      %p47 = scmp.ne.s32.totalorder %s39, %s42
      %p48 = scmp.eq.s32.totalorder %s15, 0
      %p49 = por %p47, %p48
      %p50 = scmp.ne.s32.totalorder %s39, %s42
      %p51 = scmp.eq.s32.totalorder %s20, 5
      %p52 = por %p50, %p51
      %p53 = scmp.ne.s32.totalorder %s42, %s43
      %p54 = scmp.eq.s32.totalorder %s20, 0
      %p55 = por %p53, %p54
      %p56 = scmp.ne.s32.totalorder %s42, %s43
      %p57 = scmp.eq.s32.totalorder %s21, 5
      %p58 = por %p56, %p57
      %p60 = scmp.ne.s32.totalorder %s43, %s59
      %p61 = scmp.eq.s32.totalorder %s21, 0
      %p62 = por %p60, %p61
      %s63 = smul.u32 %s23, 8
      %s64 = ssub.s32 %s63, 1
      %p65 = scmp.gt.s32.totalorder %s64, 0
      %s66 = scalar_select %p65, %s64, 0
      %s67 = smul.u32 %s30, 8
      %s68 = ssub.s32 %s67, 1
      %p69 = scmp.gt.s32.totalorder %s68, 0
      %s70 = scalar_select %p69, %s68, 0
      %s71 = ssub.s32 %s22, %s34
      %s72 = ssub.s32 %s66, %s70
      %s73 = sor.u32 %s71, %s72
      %p74 = scmp.eq.s32.totalorder %s73, 0
      %s76 = sadd.s32 %s75, 1
      %s77 = scalar_select %p74, %s75, %s76
      %p80 = pneg %p74
      %p81 = scmp.eq.s32.totalorder %s15, 5
      %p82 = por %p80, %p81
      %p83 = scmp.ne.s32.totalorder %s75, %s78
      %p84 = scmp.eq.s32.totalorder %s15, 0
      %p85 = por %p83, %p84
      %p86 = scmp.ne.s32.totalorder %s75, %s78
      %p87 = scmp.eq.s32.totalorder %s20, 5
      %p88 = por %p86, %p87
      %p89 = scmp.ne.s32.totalorder %s78, %s79
      %p90 = scmp.eq.s32.totalorder %s20, 0
      %p91 = por %p89, %p90
      %p92 = scmp.ne.s32.totalorder %s78, %s79
      %p93 = scmp.eq.s32.totalorder %s21, 5
      %p94 = por %p92, %p93
      %p96 = scmp.ne.s32.totalorder %s79, %s95
      %p97 = scmp.eq.s32.totalorder %s21, 0
      %p98 = por %p96, %p97
      %s99 = smul.u32 %s23, 8
      %s100 = sadd.s32 %s99, 8
      %p101 = scmp.lt.s32.totalorder %s100, 19
      %s102 = scalar_select %p101, %s100, 19
      %s103 = smul.u32 %s30, 8
      %s104 = sadd.s32 %s103, 8
      %p105 = scmp.lt.s32.totalorder %s104, 19
      %s106 = scalar_select %p105, %s104, 19
      %s107 = ssub.s32 %s22, %s34
      %s108 = ssub.s32 %s102, %s106
      %s109 = sor.u32 %s107, %s108
      %p110 = scmp.eq.s32.totalorder %s109, 0
      %s112 = sadd.s32 %s111, 1
      %s113 = scalar_select %p110, %s111, %s112
      %p116 = pneg %p110
      %p117 = scmp.eq.s32.totalorder %s15, 5
      %p118 = por %p116, %p117
      %p119 = scmp.ne.s32.totalorder %s111, %s114
      %p120 = scmp.eq.s32.totalorder %s15, 0
      %p121 = por %p119, %p120
      %p122 = scmp.ne.s32.totalorder %s111, %s114
      %p123 = scmp.eq.s32.totalorder %s20, 5
      %p124 = por %p122, %p123
      %p125 = scmp.ne.s32.totalorder %s114, %s115
      %p126 = scmp.eq.s32.totalorder %s20, 0
      %p127 = por %p125, %p126
      %p128 = scmp.ne.s32.totalorder %s114, %s115
      %p129 = scmp.eq.s32.totalorder %s21, 5
      %p130 = por %p128, %p129
      %p132 = scmp.ne.s32.totalorder %s115, %s131
      %p133 = scmp.eq.s32.totalorder %s21, 0
      %p134 = por %p132, %p133
      %s135 = ssub.s32 %s22, %s34
      %p136 = scmp.eq.s32.totalorder %s135, 0
      %s138 = sadd.s32 %s137, 1
      %s139 = scalar_select %p136, %s137, %s138
      %p142 = pneg %p136
      %p143 = scmp.eq.s32.totalorder %s15, 5
      %p144 = por %p142, %p143
      %p145 = scmp.ne.s32.totalorder %s137, %s140
      %p146 = scmp.eq.s32.totalorder %s15, 0
      %p147 = por %p145, %p146
      %p148 = scmp.ne.s32.totalorder %s137, %s140
      %p149 = scmp.eq.s32.totalorder %s20, 5
      %p150 = por %p148, %p149
      %p151 = scmp.ne.s32.totalorder %s140, %s141
      %p152 = scmp.eq.s32.totalorder %s20, 0
      %p153 = por %p151, %p152
      %p154 = scmp.ne.s32.totalorder %s140, %s141
      %p155 = scmp.eq.s32.totalorder %s21, 5
      %p156 = por %p154, %p155
      %p158 = scmp.ne.s32.totalorder %s141, %s157
      %p159 = scmp.eq.s32.totalorder %s21, 0
      %p160 = por %p158, %p159
      %s162 = sadd.s32 %s161, 1
      %p165 = scmp.eq.s32.totalorder %s15, 5
      %p166 = scmp.ne.s32.totalorder %s161, %s163
      %p167 = scmp.eq.s32.totalorder %s15, 0
      %p168 = por %p166, %p167
      %p169 = scmp.ne.s32.totalorder %s161, %s163
      %p170 = scmp.eq.s32.totalorder %s20, 5
      %p171 = por %p169, %p170
      %p172 = scmp.ne.s32.totalorder %s163, %s164
      %p173 = scmp.eq.s32.totalorder %s20, 0
      %p174 = por %p172, %p173
      %p175 = scmp.ne.s32.totalorder %s163, %s164
      %p176 = scmp.eq.s32.totalorder %s21, 5
      %p177 = por %p175, %p176
      %p179 = scmp.ne.s32.totalorder %s164, %s178
      %p180 = scmp.eq.s32.totalorder %s21, 0
      %p181 = por %p179, %p180
      %s182 = ssub.s32 %s22, %s34
      %s183 = ssub.s32 %s23, %s30
      %s184 = sor.u32 %s182, %s183
      %p185 = scmp.eq.s32.totalorder %s184, 0
      %s187 = sadd.s32 %s186, 1
      %s188 = scalar_select %p185, %s186, %s187
      %p191 = pneg %p185
      %p192 = scmp.eq.s32.totalorder %s15, 5
      %p193 = por %p191, %p192
      %p194 = scmp.ne.s32.totalorder %s186, %s189
      %p195 = scmp.eq.s32.totalorder %s15, 0
      %p196 = por %p194, %p195
      %p197 = scmp.ne.s32.totalorder %s186, %s189
      %p198 = scmp.eq.s32.totalorder %s20, 5
      %p199 = por %p197, %p198
      %p200 = scmp.ne.s32.totalorder %s189, %s190
      %p201 = scmp.eq.s32.totalorder %s20, 0
      %p202 = por %p200, %p201
      %p203 = scmp.ne.s32.totalorder %s189, %s190
      %p204 = scmp.eq.s32.totalorder %s21, 5
      %p205 = por %p203, %p204
      %p207 = scmp.ne.s32.totalorder %s190, %s206
      %p208 = scmp.eq.s32.totalorder %s21, 0
      %p209 = por %p207, %p208
      %p210 = scmp.le.s32.totalorder 1, %s15
      %p211 = scmp.lt.s32.totalorder %s15, 7
      %p212 = pnand %p210, %p211
      %p213 = pneg %p212
      // Predicated region
      $region9: #{_lambda_.3} parent=5 // pred_check
        _
      $region10: #{_lambda_.3} parent=5 // pred_check_branch
        %215 = sbr.rel (%p212) target = $region12
      $region11: #{_lambda_.3} parent=5 // pred_region
        %s216 = ssub.s32 %s15, 1
        // Predicated region
        $region13: #{_lambda_.3} parent=11 // pred_check
          %p217 = pneg %p174
        $region14: #{_lambda_.3} parent=11 // pred_check_branch
          %219 = sbr.rel (%p217) target = $region16
        $region15: #{_lambda_.3} parent=11 // pred_region
          %s221 = ssub.s32 16, 16
          %222 = vsyncadd [#allocation6], %s221
          %s224 = sshll.u32 %s4, 4
          %s225 = int_to_ptr.vmem [resolvable:$true] %s224
          %227 = dma.vmem_to_smem %s225, 16, [#allocation4], [#allocation6]
        $region16: #{_lambda_.3} parent=11 // pred_fallthru
          _
      $region12: #{_lambda_.3} parent=5 // pred_fallthru
        _
      %p228 = scmp.lt.s32.totalorder %s15, 6
      // Predicated region
      $region17: #{_lambda_.3} parent=5 // pred_check
        %p229 = pneg %p228
      $region18: #{_lambda_.3} parent=5 // pred_check_branch
        %231 = sbr.rel (%p229) target = $region20
      $region19: #{_lambda_.3} parent=5 // pred_region
        // Predicated region
        $region21: #{_lambda_.3} parent=19 // pred_check
          %p232 = pneg %p49
        $region22: #{_lambda_.3} parent=19 // pred_check_branch
          %234 = sbr.rel (%p232) target = $region24
        $region23: #{_lambda_.3} parent=19 // pred_region
          %s235 = smul.u32 8, %s23
          %s236 = ssub.s32 20, %s235
          %p237 = scmp.lt.s32.totalorder %s236, 8
          %s238 = scalar_select %p237, %s236, 8
          %s239 = smul.u32 64, %s238
          %s240 = smul.u32 %s239, 2
          %s241 = smul.u32 %s240, 2
          %p242 = scmp.lt.s32.totalorder %s22, 1
          %s243 = scalar_select %p242, %s22, 1
          %p244 = scmp.lt.s32.totalorder %s235, 19
          %s245 = scalar_select %p244, %s235, 19
          %s246 = smul.addr %s245, 4
          %s247 = smul.addr %s243, 80
          %s248 = sadd.s32 %s246, %s247
          %s249 = smul.addr %s248, 4
          %s250 = scalar_lea.vmem %s0, %s249
          %s251 = smul.u32 8, %s23
          %s252 = ssub.s32 20, %s251
          %p253 = scmp.lt.s32.totalorder %s252, 8
          %s254 = scalar_select %p253, %s252, 8
          %s255 = smul.u32 64, %s254
          %s256 = smul.u32 %s255, 2
          %s257 = smul.u32 %s256, 2
        $region24: #{_lambda_.3} parent=19 // pred_fallthru
          _
        // Predicated region
        $region25: #{_lambda_.3} parent=19 // pred_check
          %p258 = pneg %p85
        $region26: #{_lambda_.3} parent=19 // pred_check_branch
          %260 = sbr.rel (%p258) target = $region28
        $region27: #{_lambda_.3} parent=19 // pred_region
          %s261 = smul.u32 %s23, 8
          %s262 = ssub.s32 %s261, 1
          %p263 = scmp.gt.s32.totalorder %s262, 0
          %s264 = scalar_select %p263, %s262, 0
          %p265 = scmp.lt.s32.totalorder %s22, 1
          %s266 = scalar_select %p265, %s22, 1
          %p267 = scmp.lt.s32.totalorder %s264, 19
          %s268 = scalar_select %p267, %s264, 19
          %s269 = smul.addr %s268, 4
          %s270 = smul.addr %s266, 80
          %s271 = sadd.s32 %s269, %s270
          %s272 = smul.addr %s271, 4
          %s273 = scalar_lea.vmem %s1, %s272
          %s274 = smul.u32 %s23, 8
          %s275 = ssub.s32 %s274, 1
          %p276 = scmp.gt.s32.totalorder %s275, 0
          %s277 = scalar_select %p276, %s275, 0
        $region28: #{_lambda_.3} parent=19 // pred_fallthru
          _
        // Predicated region
        $region29: #{_lambda_.3} parent=19 // pred_check
          %p278 = pneg %p121
        $region30: #{_lambda_.3} parent=19 // pred_check_branch
          %280 = sbr.rel (%p278) target = $region32
        $region31: #{_lambda_.3} parent=19 // pred_region
          %s281 = smul.u32 %s23, 8
          %s282 = sadd.s32 %s281, 8
          %p283 = scmp.lt.s32.totalorder %s282, 19
          %s284 = scalar_select %p283, %s282, 19
          %p285 = scmp.lt.s32.totalorder %s22, 1
          %s286 = scalar_select %p285, %s22, 1
          %p287 = scmp.lt.s32.totalorder %s284, 19
          %s288 = scalar_select %p287, %s284, 19
          %s289 = smul.addr %s288, 4
          %s290 = smul.addr %s286, 80
          %s291 = sadd.s32 %s289, %s290
          %s292 = smul.addr %s291, 4
          %s293 = scalar_lea.vmem %s2, %s292
          %s294 = smul.u32 %s23, 8
          %s295 = sadd.s32 %s294, 8
          %p296 = scmp.lt.s32.totalorder %s295, 19
          %s297 = scalar_select %p296, %s295, 19
        $region32: #{_lambda_.3} parent=19 // pred_fallthru
          _
        // Predicated region
        $region33: #{_lambda_.3} parent=19 // pred_check
          %p298 = pneg %p147
        $region34: #{_lambda_.3} parent=19 // pred_check_branch
          %300 = sbr.rel (%p298) target = $region36
        $region35: #{_lambda_.3} parent=19 // pred_region
          %p301 = scmp.lt.s32.totalorder %s22, 1
          %s302 = scalar_select %p301, %s22, 1
          %s303 = smul.addr %s302, 2
          %s304 = scalar_lea.vmem %s3, %s303
        $region36: #{_lambda_.3} parent=19 // pred_fallthru
          _
      $region20: #{_lambda_.3} parent=5 // pred_fallthru
        _
      %p305 = scmp.le.s32.totalorder 1, %s15
      %p306 = scmp.lt.s32.totalorder %s15, 7
      %p307 = pnand %p305, %p306
      %p308 = pneg %p307
      // Predicated region
      $region37: #{_lambda_.3} parent=5 // pred_check
        _
      $region38: #{_lambda_.3} parent=5 // pred_check_branch
        %310 = sbr.rel (%p307) target = $region40
      $region39: #{_lambda_.3} parent=5 // pred_region
        %s311 = ssub.s32 %s15, 1
        // Predicated region
        $region41: #{_lambda_.3} parent=39 // pred_check
          %p312 = pneg %p174
        $region42: #{_lambda_.3} parent=39 // pred_check_branch
          %314 = sbr.rel (%p312) target = $region44
        $region43: #{_lambda_.3} parent=39 // pred_region
          %315 = dma.done [#allocation6], 16
        $region44: #{_lambda_.3} parent=39 // pred_fallthru
          _
        %316 = sfence
        %s317 = smul.u32 8, %s25
        %s318 = ssub.s32 20, %s317
        %p319 = scmp.lt.s32.totalorder %s318, 8
        %s320 = scalar_select %p319, %s318, 8
        %s321 = smul.u32 64, %s320
        %s322 = smul.u32 %s321, 2
        %s323 = smul.u32 %s322, 2
        %p324 = scmp.lt.s32.totalorder %s24, 1
        %s325 = scalar_select %p324, %s24, 1
        %p326 = scmp.lt.s32.totalorder %s317, 19
        %s327 = scalar_select %p326, %s317, 19
        %s328 = smul.addr %s327, 4
        %s329 = smul.addr %s325, 80
        %s330 = sadd.s32 %s328, %s329
        %s331 = smul.addr %s330, 4
        %s332 = scalar_lea.vmem %s0, %s331
        %p333 = pneg %p55
        %p334 = pneg %p52
        %s335 = smul.u32 %s25, 8
        %s336 = ssub.s32 %s335, 1
        %p337 = scmp.gt.s32.totalorder %s336, 0
        %s338 = scalar_select %p337, %s336, 0
        %p339 = scmp.lt.s32.totalorder %s24, 1
        %s340 = scalar_select %p339, %s24, 1
        %p341 = scmp.lt.s32.totalorder %s338, 19
        %s342 = scalar_select %p341, %s338, 19
        %s343 = smul.addr %s342, 4
        %s344 = smul.addr %s340, 80
        %s345 = sadd.s32 %s343, %s344
        %s346 = smul.addr %s345, 4
        %s347 = scalar_lea.vmem %s1, %s346
        %p348 = pneg %p91
        %p349 = pneg %p88
        %s350 = smul.u32 %s25, 8
        %s351 = sadd.s32 %s350, 8
        %p352 = scmp.lt.s32.totalorder %s351, 19
        %s353 = scalar_select %p352, %s351, 19
        %p354 = scmp.lt.s32.totalorder %s24, 1
        %s355 = scalar_select %p354, %s24, 1
        %p356 = scmp.lt.s32.totalorder %s353, 19
        %s357 = scalar_select %p356, %s353, 19
        %s358 = smul.addr %s357, 4
        %s359 = smul.addr %s355, 80
        %s360 = sadd.s32 %s358, %s359
        %s361 = smul.addr %s360, 4
        %s362 = scalar_lea.vmem %s2, %s361
        %p363 = pneg %p127
        %p364 = pneg %p124
        %p365 = scmp.lt.s32.totalorder %s24, 1
        %s366 = scalar_select %p365, %s24, 1
        %s367 = smul.addr %s366, 2
        %s368 = scalar_lea.vmem %s3, %s367
        %p369 = pneg %p153
        %p370 = pneg %p150
        %p371 = pneg %p174
        %p372 = pneg %p171
        %p373 = pneg %p202
        %p374 = pneg %p199
        %s375 = sand.u32 %s189, 1
        %s376 = scalar_lea.sflag [#allocation5], %s375
        %s377 = sand.u32 %s189, 1
        %s378 = smul.addr %s377, 128
        %s379 = scalar_lea.vmem [#allocation7], %s378
        %s380 = smul.u32 8, %s25
        %s381 = ssub.s32 20, %s380
        %p382 = scmp.lt.s32.totalorder %s381, 8
        %s383 = scalar_select %p382, %s381, 8
        %s384 = smul.u32 64, %s383
        %s385 = smul.u32 %s384, 2
        %s386 = smul.u32 %s385, 2
        %p387 = scmp.lt.s32.totalorder %s24, 1
        %s388 = scalar_select %p387, %s24, 1
        %p389 = scmp.lt.s32.totalorder %s380, 19
        %s390 = scalar_select %p389, %s380, 19
        %s391 = smul.addr %s390, 4
        %s392 = smul.addr %s388, 80
        %s393 = sadd.s32 %s391, %s392
        %s394 = smul.addr %s393, 4
        %s395 = scalar_lea.vmem %s0, %s394
        %s396 = smul.u32 8, %s25
        %s397 = ssub.s32 20, %s396
        %p398 = scmp.lt.s32.totalorder %s397, 8
        %s399 = scalar_select %p398, %s397, 8
        %s400 = smul.u32 64, %s399
        %s401 = smul.u32 %s400, 2
        %s402 = smul.u32 %s401, 2
        %s403 = smul.u32 %s25, 8
        %s404 = ssub.s32 %s403, 1
        %p405 = scmp.gt.s32.totalorder %s404, 0
        %s406 = scalar_select %p405, %s404, 0
        %p407 = scmp.lt.s32.totalorder %s24, 1
        %s408 = scalar_select %p407, %s24, 1
        %p409 = scmp.lt.s32.totalorder %s406, 19
        %s410 = scalar_select %p409, %s406, 19
        %s411 = smul.addr %s410, 4
        %s412 = smul.addr %s408, 80
        %s413 = sadd.s32 %s411, %s412
        %s414 = smul.addr %s413, 4
        %s415 = scalar_lea.vmem %s1, %s414
        %s416 = smul.u32 %s25, 8
        %s417 = ssub.s32 %s416, 1
        %p418 = scmp.gt.s32.totalorder %s417, 0
        %s419 = scalar_select %p418, %s417, 0
        %s420 = smul.u32 %s25, 8
        %s421 = sadd.s32 %s420, 8
        %p422 = scmp.lt.s32.totalorder %s421, 19
        %s423 = scalar_select %p422, %s421, 19
        %p424 = scmp.lt.s32.totalorder %s24, 1
        %s425 = scalar_select %p424, %s24, 1
        %p426 = scmp.lt.s32.totalorder %s423, 19
        %s427 = scalar_select %p426, %s423, 19
        %s428 = smul.addr %s427, 4
        %s429 = smul.addr %s425, 80
        %s430 = sadd.s32 %s428, %s429
        %s431 = smul.addr %s430, 4
        %s432 = scalar_lea.vmem %s2, %s431
        %s433 = smul.u32 %s25, 8
        %s434 = sadd.s32 %s433, 8
        %p435 = scmp.lt.s32.totalorder %s434, 19
        %s436 = scalar_select %p435, %s434, 19
        %p437 = scmp.lt.s32.totalorder %s24, 1
        %s438 = scalar_select %p437, %s24, 1
        %s439 = smul.addr %s438, 2
        %s440 = scalar_lea.vmem %s3, %s439
        %s441 = smul.u32 8, %s25
        %s442 = ssub.s32 20, %s441
        %p443 = scmp.lt.s32.totalorder %s442, 8
        %s444 = scalar_select %p443, %s442, 8
        %s445 = smul.u32 64, %s444
        %s446 = smul.u32 %s445, 2
        %s447 = smul.u32 %s446, 2
        %v448 = vld [vmem:[%s440] sm:$0x3]
        %v449 = vld [vmem:[%s395] sm:$0xff]
        %v450 = vld [vmem:[%s395 + $0x8] sm:$0xff]
        %v451 = vld [vmem:[%s395 + $0x10] sm:$0xff]
        %v452 = vld [vmem:[%s395 + $0x18] sm:$0xff]
        %v453 = vld [vmem:[%s395 + $0x20] sm:$0xff]
        %v454 = vld [vmem:[%s395 + $0x28] sm:$0xff]
        %v455 = vld [vmem:[%s395 + $0x30] sm:$0xff]
        %v456 = vld [vmem:[%s395 + $0x38] sm:$0xff]
        %v457 = vld [vmem:[%s395 + $0x40] sm:$0xff]
        %v458 = vld [vmem:[%s395 + $0x48] sm:$0xff]
        %v459 = vld [vmem:[%s395 + $0x50] sm:$0xff]
        %v460 = vld [vmem:[%s395 + $0x58] sm:$0xff]
        %v461 = vld [vmem:[%s395 + $0x60] sm:$0xff]
        %v462 = vld [vmem:[%s395 + $0x68] sm:$0xff]
        %v463 = vld [vmem:[%s395 + $0x70] sm:$0xff]
        %v464 = vld [vmem:[%s395 + $0x78] sm:$0xff]
        %v465 = vunpack.c.l.bf16 %v449
        %v466 = vunpack.c.h.bf16 %v449
        %v467 = vunpack.c.l.bf16 %v450
        %v468 = vunpack.c.h.bf16 %v450
        %v469 = vunpack.c.l.bf16 %v451
        %v470 = vunpack.c.h.bf16 %v451
        %v471 = vunpack.c.l.bf16 %v452
        %v472 = vunpack.c.h.bf16 %v452
        %v473 = vunpack.c.l.bf16 %v453
        %v474 = vunpack.c.h.bf16 %v453
        %v475 = vunpack.c.l.bf16 %v454
        %v476 = vunpack.c.h.bf16 %v454
        %v477 = vunpack.c.l.bf16 %v455
        %v478 = vunpack.c.h.bf16 %v455
        %v479 = vunpack.c.l.bf16 %v456
        %v480 = vunpack.c.h.bf16 %v456
        %v481 = vunpack.c.l.bf16 %v457
        %v482 = vunpack.c.h.bf16 %v457
        %v483 = vunpack.c.l.bf16 %v458
        %v484 = vunpack.c.h.bf16 %v458
        %v485 = vunpack.c.l.bf16 %v459
        %v486 = vunpack.c.h.bf16 %v459
        %v487 = vunpack.c.l.bf16 %v460
        %v488 = vunpack.c.h.bf16 %v460
        %v489 = vunpack.c.l.bf16 %v461
        %v490 = vunpack.c.h.bf16 %v461
        %v491 = vunpack.c.l.bf16 %v462
        %v492 = vunpack.c.h.bf16 %v462
        %v493 = vunpack.c.l.bf16 %v463
        %v494 = vunpack.c.h.bf16 %v463
        %v495 = vunpack.c.l.bf16 %v464
        %v496 = vunpack.c.h.bf16 %v464
        %v498 = vlaneseq
        %v499 = vshrl.u32 %v498, 7
        %v500 = vsub.s32 0, %v499
        %v501 = vrot.slane %v448, %v500
        %v502 = vlaneseq
        %v503 = vshrl.u32 %v502, 7
        %v504 = vsub.s32 1, %v503
        %v505 = vrot.slane %v448, %v504
        %v508 = vmul.f32 %v465, %v501
        %v509 = vmul.f32 %v466, %v505
        %v510 = vmul.f32 %v467, %v501
        %v511 = vmul.f32 %v468, %v505
        %v512 = vmul.f32 %v469, %v501
        %v513 = vmul.f32 %v470, %v505
        %v514 = vmul.f32 %v471, %v501
        %v515 = vmul.f32 %v472, %v505
        %v516 = vmul.f32 %v473, %v501
        %v517 = vmul.f32 %v474, %v505
        %v518 = vmul.f32 %v475, %v501
        %v519 = vmul.f32 %v476, %v505
        %v520 = vmul.f32 %v477, %v501
        %v521 = vmul.f32 %v478, %v505
        %v522 = vmul.f32 %v479, %v501
        %v523 = vmul.f32 %v480, %v505
        %v524 = vmul.f32 %v481, %v501
        %v525 = vmul.f32 %v482, %v505
        %v526 = vmul.f32 %v483, %v501
        %v527 = vmul.f32 %v484, %v505
        %v528 = vmul.f32 %v485, %v501
        %v529 = vmul.f32 %v486, %v505
        %v530 = vmul.f32 %v487, %v501
        %v531 = vmul.f32 %v488, %v505
        %v532 = vmul.f32 %v489, %v501
        %v533 = vmul.f32 %v490, %v505
        %v534 = vmul.f32 %v491, %v501
        %v535 = vmul.f32 %v492, %v505
        %v536 = vmul.f32 %v493, %v501
        %v537 = vmul.f32 %v494, %v505
        %v538 = vmul.f32 %v495, %v501
        %v539 = vmul.f32 %v496, %v505
        %v540 = vadd.f32 %v508, %v509
        %541 = vadd.xlane.f32.xlu0 %v540
        %v542 = vpop.xlane.xlu0 %541
        %v543 = vadd.f32 %v510, %v511
        %544 = vadd.xlane.f32.xlu0 %v543
        %v545 = vpop.xlane.xlu0 %544
        %v546 = vadd.f32 %v512, %v513
        %547 = vadd.xlane.f32.xlu0 %v546
        %v548 = vpop.xlane.xlu0 %547
        %v549 = vadd.f32 %v514, %v515
        %550 = vadd.xlane.f32.xlu0 %v549
        %v551 = vpop.xlane.xlu0 %550
        %v552 = vadd.f32 %v516, %v517
        %553 = vadd.xlane.f32.xlu0 %v552
        %v554 = vpop.xlane.xlu0 %553
        %v555 = vadd.f32 %v518, %v519
        %556 = vadd.xlane.f32.xlu0 %v555
        %v557 = vpop.xlane.xlu0 %556
        %v558 = vadd.f32 %v520, %v521
        %559 = vadd.xlane.f32.xlu0 %v558
        %v560 = vpop.xlane.xlu0 %559
        %v561 = vadd.f32 %v522, %v523
        %562 = vadd.xlane.f32.xlu0 %v561
        %v563 = vpop.xlane.xlu0 %562
        %v564 = vadd.f32 %v524, %v525
        %565 = vadd.xlane.f32.xlu0 %v564
        %v566 = vpop.xlane.xlu0 %565
        %v567 = vadd.f32 %v526, %v527
        %568 = vadd.xlane.f32.xlu0 %v567
        %v569 = vpop.xlane.xlu0 %568
        %v570 = vadd.f32 %v528, %v529
        %571 = vadd.xlane.f32.xlu0 %v570
        %v572 = vpop.xlane.xlu0 %571
        %v573 = vadd.f32 %v530, %v531
        %574 = vadd.xlane.f32.xlu0 %v573
        %v575 = vpop.xlane.xlu0 %574
        %v576 = vadd.f32 %v532, %v533
        %577 = vadd.xlane.f32.xlu0 %v576
        %v578 = vpop.xlane.xlu0 %577
        %v579 = vadd.f32 %v534, %v535
        %580 = vadd.xlane.f32.xlu0 %v579
        %v581 = vpop.xlane.xlu0 %580
        %v582 = vadd.f32 %v536, %v537
        %583 = vadd.xlane.f32.xlu0 %v582
        %v584 = vpop.xlane.xlu0 %583
        %v585 = vadd.f32 %v538, %v539
        %586 = vadd.xlane.f32.xlu0 %v585
        %v587 = vpop.xlane.xlu0 %586
        %v588 = vmul.f32 %v542, 0.00390625
        %v589 = vmul.f32 %v545, 0.00390625
        %v590 = vmul.f32 %v548, 0.00390625
        %v591 = vmul.f32 %v551, 0.00390625
        %v592 = vmul.f32 %v554, 0.00390625
        %v593 = vmul.f32 %v557, 0.00390625
        %v594 = vmul.f32 %v560, 0.00390625
        %v595 = vmul.f32 %v563, 0.00390625
        %v596 = vmul.f32 %v566, 0.00390625
        %v597 = vmul.f32 %v569, 0.00390625
        %v598 = vmul.f32 %v572, 0.00390625
        %v599 = vmul.f32 %v575, 0.00390625
        %v600 = vmul.f32 %v578, 0.00390625
        %v601 = vmul.f32 %v581, 0.00390625
        %v602 = vmul.f32 %v584, 0.00390625
        %v603 = vmul.f32 %v587, 0.00390625
        %v604 = vmax.f32 %v508, %v509
        %605 = vmax.xlane.f32.xlu0 %v604
        %v606 = vpop.xlane.xlu0 %605
        %v607 = vmax.f32 %v510, %v511
        %608 = vmax.xlane.f32.xlu0 %v607
        %v609 = vpop.xlane.xlu0 %608
        %v610 = vmax.f32 %v512, %v513
        %611 = vmax.xlane.f32.xlu0 %v610
        %v612 = vpop.xlane.xlu0 %611
        %v613 = vmax.f32 %v514, %v515
        %614 = vmax.xlane.f32.xlu0 %v613
        %v615 = vpop.xlane.xlu0 %614
        %v616 = vmax.f32 %v516, %v517
        %617 = vmax.xlane.f32.xlu0 %v616
        %v618 = vpop.xlane.xlu0 %617
        %v619 = vmax.f32 %v518, %v519
        %620 = vmax.xlane.f32.xlu0 %v619
        %v621 = vpop.xlane.xlu0 %620
        %v622 = vmax.f32 %v520, %v521
        %623 = vmax.xlane.f32.xlu0 %v622
        %v624 = vpop.xlane.xlu0 %623
        %v625 = vmax.f32 %v522, %v523
        %626 = vmax.xlane.f32.xlu0 %v625
        %v627 = vpop.xlane.xlu0 %626
        %v628 = vmax.f32 %v524, %v525
        %629 = vmax.xlane.f32.xlu0 %v628
        %v630 = vpop.xlane.xlu0 %629
        %v631 = vmax.f32 %v526, %v527
        %632 = vmax.xlane.f32.xlu0 %v631
        %v633 = vpop.xlane.xlu0 %632
        %v634 = vmax.f32 %v528, %v529
        %635 = vmax.xlane.f32.xlu0 %v634
        %v636 = vpop.xlane.xlu0 %635
        %v637 = vmax.f32 %v530, %v531
        %638 = vmax.xlane.f32.xlu0 %v637
        %v639 = vpop.xlane.xlu0 %638
        %v640 = vmax.f32 %v532, %v533
        %641 = vmax.xlane.f32.xlu0 %v640
        %v642 = vpop.xlane.xlu0 %641
        %v643 = vmax.f32 %v534, %v535
        %644 = vmax.xlane.f32.xlu0 %v643
        %v645 = vpop.xlane.xlu0 %644
        %v646 = vmax.f32 %v536, %v537
        %647 = vmax.xlane.f32.xlu0 %v646
        %v648 = vpop.xlane.xlu0 %647
        %v649 = vmax.f32 %v538, %v539
        %650 = vmax.xlane.f32.xlu0 %v649
        %v651 = vpop.xlane.xlu0 %650
        %s652 = smul.u32 %s25, 8
        %v653 = vlaneseq
        %v654 = vshrl.u32 %v653, 7
        %v655 = vstv %s652
        %v656 = vadd.s32 %v655, %v654
        %vm657 = vcmp.lt.s32.totalorder %v656, 20
        %v674 = vlaneseq
        %v675 = vand.u32 %v674, 127
        %v676 = vlaneseq
        %v677 = vshrl.u32 %v676, 7
        %v678 = vsub.s32 %v675, %v677
        %v679 = vrot.slane %v588, %v678
        %v680 = vadd.s32 %v675, 4294967288
        %v681 = vlaneseq
        %v682 = vshrl.u32 %v681, 7
        %v683 = vsub.s32 %v680, %v682
        %v684 = vrot.slane %v589, %v683
        %vm685 = vcmask 130112
        %v686 = vsel %vm685, %v684, %v679
        %v687 = vlaneseq
        %v688 = vshrl.u32 %v687, 7
        %v689 = vsub.s32 %v675, %v688
        %v690 = vrot.slane %v590, %v689
        %v691 = vlaneseq
        %v692 = vshrl.u32 %v691, 7
        %v693 = vsub.s32 %v680, %v692
        %v694 = vrot.slane %v591, %v693
        %v695 = vsel %vm685, %v694, %v690
        %v696 = vlaneseq
        %v697 = vshrl.u32 %v696, 7
        %v698 = vsub.s32 %v675, %v697
        %v699 = vrot.slane %v592, %v698
        %v700 = vlaneseq
        %v701 = vshrl.u32 %v700, 7
        %v702 = vsub.s32 %v680, %v701
        %v703 = vrot.slane %v593, %v702
        %v704 = vsel %vm685, %v703, %v699
        %v705 = vlaneseq
        %v706 = vshrl.u32 %v705, 7
        %v707 = vsub.s32 %v675, %v706
        %v708 = vrot.slane %v594, %v707
        %v709 = vlaneseq
        %v710 = vshrl.u32 %v709, 7
        %v711 = vsub.s32 %v680, %v710
        %v712 = vrot.slane %v595, %v711
        %v713 = vsel %vm685, %v712, %v708
        %v714 = vlaneseq
        %v715 = vshrl.u32 %v714, 7
        %v716 = vsub.s32 %v675, %v715
        %v717 = vrot.slane %v596, %v716
        %v718 = vlaneseq
        %v719 = vshrl.u32 %v718, 7
        %v720 = vsub.s32 %v680, %v719
        %v721 = vrot.slane %v597, %v720
        %v722 = vsel %vm685, %v721, %v717
        %v723 = vlaneseq
        %v724 = vshrl.u32 %v723, 7
        %v725 = vsub.s32 %v675, %v724
        %v726 = vrot.slane %v598, %v725
        %v727 = vlaneseq
        %v728 = vshrl.u32 %v727, 7
        %v729 = vsub.s32 %v680, %v728
        %v730 = vrot.slane %v599, %v729
        %v731 = vsel %vm685, %v730, %v726
        %v732 = vlaneseq
        %v733 = vshrl.u32 %v732, 7
        %v734 = vsub.s32 %v675, %v733
        %v735 = vrot.slane %v600, %v734
        %v736 = vlaneseq
        %v737 = vshrl.u32 %v736, 7
        %v738 = vsub.s32 %v680, %v737
        %v739 = vrot.slane %v601, %v738
        %v740 = vsel %vm685, %v739, %v735
        %v741 = vlaneseq
        %v742 = vshrl.u32 %v741, 7
        %v743 = vsub.s32 %v675, %v742
        %v744 = vrot.slane %v602, %v743
        %v745 = vlaneseq
        %v746 = vshrl.u32 %v745, 7
        %v747 = vsub.s32 %v680, %v746
        %v748 = vrot.slane %v603, %v747
        %v749 = vsel %vm685, %v748, %v744
        %vm750 = vcmask 1041409
        %v751 = vsel %vm750, %v695, %v686
        %vm752 = vcmask 1042434
        %v753 = vsel %vm752, %v704, %v751
        %vm754 = vcmask 1043459
        %v755 = vsel %vm754, %v713, %v753
        %vm756 = vcmask 1044484
        %v757 = vsel %vm756, %v722, %v755
        %vm758 = vcmask 1045509
        %v759 = vsel %vm758, %v731, %v757
        %vm760 = vcmask 1046534
        %v761 = vsel %vm760, %v740, %v759
        %vm762 = vcmask 1047559
        %v763 = vsel %vm762, %v749, %v761
        %v765 = vsel %vm657, %v763, 0.0
        %v782 = vlaneseq
        %v783 = vshrl.u32 %v782, 7
        %v784 = vsub.s32 %v675, %v783
        %v785 = vrot.slane %v606, %v784
        %v786 = vlaneseq
        %v787 = vshrl.u32 %v786, 7
        %v788 = vsub.s32 %v680, %v787
        %v789 = vrot.slane %v609, %v788
        %v790 = vsel %vm685, %v789, %v785
        %v791 = vlaneseq
        %v792 = vshrl.u32 %v791, 7
        %v793 = vsub.s32 %v675, %v792
        %v794 = vrot.slane %v612, %v793
        %v795 = vlaneseq
        %v796 = vshrl.u32 %v795, 7
        %v797 = vsub.s32 %v680, %v796
        %v798 = vrot.slane %v615, %v797
        %v799 = vsel %vm685, %v798, %v794
        %v800 = vlaneseq
        %v801 = vshrl.u32 %v800, 7
        %v802 = vsub.s32 %v675, %v801
        %v803 = vrot.slane %v618, %v802
        %v804 = vlaneseq
        %v805 = vshrl.u32 %v804, 7
        %v806 = vsub.s32 %v680, %v805
        %v807 = vrot.slane %v621, %v806
        %v808 = vsel %vm685, %v807, %v803
        %v809 = vlaneseq
        %v810 = vshrl.u32 %v809, 7
        %v811 = vsub.s32 %v675, %v810
        %v812 = vrot.slane %v624, %v811
        %v813 = vlaneseq
        %v814 = vshrl.u32 %v813, 7
        %v815 = vsub.s32 %v680, %v814
        %v816 = vrot.slane %v627, %v815
        %v817 = vsel %vm685, %v816, %v812
        %v818 = vlaneseq
        %v819 = vshrl.u32 %v818, 7
        %v820 = vsub.s32 %v675, %v819
        %v821 = vrot.slane %v630, %v820
        %v822 = vlaneseq
        %v823 = vshrl.u32 %v822, 7
        %v824 = vsub.s32 %v680, %v823
        %v825 = vrot.slane %v633, %v824
        %v826 = vsel %vm685, %v825, %v821
        %v827 = vlaneseq
        %v828 = vshrl.u32 %v827, 7
        %v829 = vsub.s32 %v675, %v828
        %v830 = vrot.slane %v636, %v829
        %v831 = vlaneseq
        %v832 = vshrl.u32 %v831, 7
        %v833 = vsub.s32 %v680, %v832
        %v834 = vrot.slane %v639, %v833
        %v835 = vsel %vm685, %v834, %v830
        %v836 = vlaneseq
        %v837 = vshrl.u32 %v836, 7
        %v838 = vsub.s32 %v675, %v837
        %v839 = vrot.slane %v642, %v838
        %v840 = vlaneseq
        %v841 = vshrl.u32 %v840, 7
        %v842 = vsub.s32 %v680, %v841
        %v843 = vrot.slane %v645, %v842
        %v844 = vsel %vm685, %v843, %v839
        %v845 = vlaneseq
        %v846 = vshrl.u32 %v845, 7
        %v847 = vsub.s32 %v675, %v846
        %v848 = vrot.slane %v648, %v847
        %v849 = vlaneseq
        %v850 = vshrl.u32 %v849, 7
        %v851 = vsub.s32 %v680, %v850
        %v852 = vrot.slane %v651, %v851
        %v853 = vsel %vm685, %v852, %v848
        %v854 = vsel %vm750, %v799, %v790
        %v855 = vsel %vm752, %v808, %v854
        %v856 = vsel %vm754, %v817, %v855
        %v857 = vsel %vm756, %v826, %v856
        %v858 = vsel %vm758, %v835, %v857
        %v859 = vsel %vm760, %v844, %v858
        %v860 = vsel %vm762, %v853, %v859
        %v862 = vsel %vm657, %v860, 0.0
        %p863 = scmp.gt.s32.totalorder %s25, 0
        %s864 = scalar_select %p863, 1, 0
        %s865 = scvt.s32.f32 %s864
        %s866 = sadd.s32 %s652, 8
        %p867 = scmp.lt.s32.totalorder %s866, 20
        %s868 = scalar_select %p867, 1, 0
        %s869 = scvt.s32.f32 %s868
        %v870 = vld [vmem:[%s415] sm:$0xff]
        %v871 = vld [vmem:[%s415 + $0x8] sm:$0xff]
        %v872 = vunpack.c.l.bf16 %v870
        %v873 = vunpack.c.h.bf16 %v870
        %v874 = vunpack.c.l.bf16 %v871
        %v875 = vunpack.c.h.bf16 %v871
        %v876 = vmul.f32 %v872, %v501
        %v877 = vmul.f32 %v873, %v505
        %v878 = vmul.f32 %v874, %v501
        %v879 = vmul.f32 %v875, %v505
        %v880 = vld [vmem:[%s432] sm:$0xff]
        %v881 = vld [vmem:[%s432 + $0x8] sm:$0xff]
        %v882 = vunpack.c.l.bf16 %v880
        %v883 = vunpack.c.h.bf16 %v880
        %v884 = vunpack.c.l.bf16 %v881
        %v885 = vunpack.c.h.bf16 %v881
        %v886 = vmul.f32 %v882, %v501
        %v887 = vmul.f32 %v883, %v505
        %v888 = vmul.f32 %v884, %v501
        %v889 = vmul.f32 %v885, %v505
        %v890 = vadd.f32 %v876, %v877
        %891 = vadd.xlane.f32.xlu0 %v890
        %v892 = vpop.xlane.xlu0 %891
        %v893 = vadd.f32 %v878, %v879
        %894 = vadd.xlane.f32.xlu0 %v893
        %v895 = vpop.xlane.xlu0 %894
        %v896 = vmul.f32 %v892, 0.00390625
        %v897 = vmul.f32 %v895, 0.00390625
        %v898 = vstv %s865
        %v899 = vmul.f32 %v896, %v898
        %v900 = vmul.f32 %v897, %v898
        %v901 = vmax.f32 %v876, %v877
        %902 = vmax.xlane.f32.xlu0 %v901
        %v903 = vpop.xlane.xlu0 %902
        %v904 = vmax.f32 %v878, %v879
        %905 = vmax.xlane.f32.xlu0 %v904
        %v906 = vpop.xlane.xlu0 %905
        %v907 = vmul.f32 %v903, %v898
        %v908 = vmul.f32 %v906, %v898
        %v909 = vadd.f32 %v886, %v887
        %910 = vadd.xlane.f32.xlu0 %v909
        %v911 = vpop.xlane.xlu0 %910
        %v912 = vadd.f32 %v888, %v889
        %913 = vadd.xlane.f32.xlu0 %v912
        %v914 = vpop.xlane.xlu0 %913
        %v915 = vmul.f32 %v911, 0.00390625
        %v916 = vmul.f32 %v914, 0.00390625
        %v917 = vstv %s869
        %v918 = vmul.f32 %v915, %v917
        %v919 = vmul.f32 %v916, %v917
        %v920 = vmax.f32 %v886, %v887
        %921 = vmax.xlane.f32.xlu0 %v920
        %v922 = vpop.xlane.xlu0 %921
        %v923 = vmax.f32 %v888, %v889
        %924 = vmax.xlane.f32.xlu0 %v923
        %v925 = vpop.xlane.xlu0 %924
        %v926 = vmul.f32 %v922, %v917
        %v927 = vmul.f32 %v925, %v917
        %vm928 = vcmask 146432
        %929 = vst.msk [vmem:[#allocation2] sm:$0xff] %vm928, 0.0
        %vm930 = vcmask 140288
        %931 = vst.msk [vmem:[#allocation2 + $0x8] sm:$0x3] %vm930, 0.0
        %932 = vst.msk [vmem:[#allocation3] sm:$0xff] %vm928, 0.0
        %933 = vst.msk [vmem:[#allocation3 + $0x8] sm:$0x3] %vm930, 0.0
        %935 = vrot.lane.b32.xlu0 %v765, 1
        %v936 = vpop.permute.xlu0 %935
        %vm938 = vcmask 138248
        %939 = vst.msk [vmem:[#allocation2 + $0x1] sm:$0xff] %vm938, %v936
        %941 = vrot.lane.b32.xlu0 %v862, 1
        %v942 = vpop.permute.xlu0 %941
        %944 = vst.msk [vmem:[#allocation3 + $0x1] sm:$0xff] %vm938, %v942
        %v947 = vadd.s32 %v675, 4294967295
        %v948 = vlaneseq
        %v949 = vshrl.u32 %v948, 7
        %v950 = vsub.s32 %v947, %v949
        %v951 = vrot.slane %v899, %v950
        %v952 = vadd.s32 %v675, 4294967287
        %v953 = vlaneseq
        %v954 = vshrl.u32 %v953, 7
        %v955 = vsub.s32 %v952, %v954
        %v956 = vrot.slane %v900, %v955
        %vm957 = vcmask 138312
        %v958 = vsel %vm957, %v956, %v951
        %vm960 = vcmask 131080
        %961 = vst.msk [vmem:[#allocation2] sm:$0x1] %vm960, %v958
        %v964 = vlaneseq
        %v965 = vshrl.u32 %v964, 7
        %v966 = vsub.s32 %v947, %v965
        %v967 = vrot.slane %v907, %v966
        %v968 = vlaneseq
        %v969 = vshrl.u32 %v968, 7
        %v970 = vsub.s32 %v952, %v969
        %v971 = vrot.slane %v908, %v970
        %v972 = vsel %vm957, %v971, %v967
        %974 = vst.msk [vmem:[#allocation3] sm:$0x1] %vm960, %v972
        %v977 = vlaneseq
        %v978 = vshrl.u32 %v977, 7
        %v979 = vsub.s32 %v947, %v978
        %v980 = vrot.slane %v918, %v979
        %v981 = vlaneseq
        %v982 = vshrl.u32 %v981, 7
        %v983 = vsub.s32 %v952, %v982
        %v984 = vrot.slane %v919, %v983
        %v985 = vsel %vm957, %v984, %v980
        %987 = vst.msk [vmem:[#allocation2 + $0x9] sm:$0x1] %vm960, %v985
        %v990 = vlaneseq
        %v991 = vshrl.u32 %v990, 7
        %v992 = vsub.s32 %v947, %v991
        %v993 = vrot.slane %v926, %v992
        %v994 = vlaneseq
        %v995 = vshrl.u32 %v994, 7
        %v996 = vsub.s32 %v952, %v995
        %v997 = vrot.slane %v927, %v996
        %v998 = vsel %vm957, %v997, %v993
        %1000 = vst.msk [vmem:[#allocation3 + $0x9] sm:$0x1] %vm960, %v998
        %s1001 = sld [smem:[#allocation4]]
        %v1002 = vld [vmem:[#allocation2] sm:$0xff]
        %v1003 = vstv %s1001
        %v1004 = vmul.f32 %v1003, %v1002
        %v1005 = vadd.f32 %v1004, 0.0
        %s1006 = sld [smem:[#allocation4 + $0x9]]
        %v1007 = vld [vmem:[#allocation3] sm:$0xff]
        %v1008 = vstv %s1006
        %v1009 = vmul.f32 %v1008, %v1007
        %v1010 = vadd.f32 %v1005, %v1009
        %s1011 = sld [smem:[#allocation4 + $0x1]]
        %v1012 = vstv %s1011
        %v1013 = vmul.f32 %v1012, %v1002
        %1015 = vrot.lane.b32.xlu0 %v1013, 127
        %v1016 = vpop.permute.xlu0 %1015
        %v1018 = vadd.f32 %v1010, %v1016
        %s1019 = sld [smem:[#allocation4 + $0xa]]
        %v1020 = vstv %s1019
        %v1021 = vmul.f32 %v1020, %v1007
        %1023 = vrot.lane.b32.xlu0 %v1021, 127
        %v1024 = vpop.permute.xlu0 %1023
        %v1026 = vadd.f32 %v1018, %v1024
        %s1027 = sld [smem:[#allocation4 + $0x2]]
        %v1028 = vstv %s1027
        %v1029 = vmul.f32 %v1028, %v1002
        %1031 = vrot.lane.b32.xlu0 %v1029, 126
        %v1032 = vpop.permute.xlu0 %1031
        %v1034 = vadd.f32 %v1026, %v1032
        %s1035 = sld [smem:[#allocation4 + $0xb]]
        %v1036 = vstv %s1035
        %v1037 = vmul.f32 %v1036, %v1007
        %1039 = vrot.lane.b32.xlu0 %v1037, 126
        %v1040 = vpop.permute.xlu0 %1039
        %v1042 = vadd.f32 %v1034, %v1040
        %s1043 = sld [smem:[#allocation4 + $0x3]]
        %v1044 = vld [vmem:[#allocation2 + $0x1] sm:$0xff]
        %v1045 = vstv %s1043
        %v1046 = vmul.f32 %v1045, %v1044
        %v1047 = vadd.f32 %v1042, %v1046
        %s1048 = sld [smem:[#allocation4 + $0xc]]
        %v1049 = vld [vmem:[#allocation3 + $0x1] sm:$0xff]
        %v1050 = vstv %s1048
        %v1051 = vmul.f32 %v1050, %v1049
        %v1052 = vadd.f32 %v1047, %v1051
        %s1053 = sld [smem:[#allocation4 + $0x4]]
        %v1054 = vstv %s1053
        %v1055 = vmul.f32 %v1054, %v1044
        %1057 = vrot.lane.b32.xlu0 %v1055, 127
        %v1058 = vpop.permute.xlu0 %1057
        %v1060 = vadd.f32 %v1052, %v1058
        %s1061 = sld [smem:[#allocation4 + $0xd]]
        %v1062 = vstv %s1061
        %v1063 = vmul.f32 %v1062, %v1049
        %1065 = vrot.lane.b32.xlu0 %v1063, 127
        %v1066 = vpop.permute.xlu0 %1065
        %v1068 = vadd.f32 %v1060, %v1066
        %s1069 = sld [smem:[#allocation4 + $0x5]]
        %v1070 = vstv %s1069
        %v1071 = vmul.f32 %v1070, %v1044
        %1073 = vrot.lane.b32.xlu0 %v1071, 126
        %v1074 = vpop.permute.xlu0 %1073
        %v1076 = vadd.f32 %v1068, %v1074
        %s1077 = sld [smem:[#allocation4 + $0xe]]
        %v1078 = vstv %s1077
        %v1079 = vmul.f32 %v1078, %v1049
        %1081 = vrot.lane.b32.xlu0 %v1079, 126
        %v1082 = vpop.permute.xlu0 %1081
        %v1084 = vadd.f32 %v1076, %v1082
        %s1085 = sld [smem:[#allocation4 + $0x6]]
        %v1086 = vld [vmem:[#allocation2 + $0x2] sm:$0xff]
        %v1087 = vstv %s1085
        %v1088 = vmul.f32 %v1087, %v1086
        %v1089 = vadd.f32 %v1084, %v1088
        %s1090 = sld [smem:[#allocation4 + $0xf]]
        %v1091 = vld [vmem:[#allocation3 + $0x2] sm:$0xff]
        %v1092 = vstv %s1090
        %v1093 = vmul.f32 %v1092, %v1091
        %v1094 = vadd.f32 %v1089, %v1093
        %s1095 = sld [smem:[#allocation4 + $0x7]]
        %v1096 = vstv %s1095
        %v1097 = vmul.f32 %v1096, %v1086
        %1099 = vrot.lane.b32.xlu0 %v1097, 127
        %v1100 = vpop.permute.xlu0 %1099
        %v1102 = vadd.f32 %v1094, %v1100
        %s1103 = sld [smem:[#allocation4 + $0x10]]
        %v1104 = vstv %s1103
        %v1105 = vmul.f32 %v1104, %v1091
        %1107 = vrot.lane.b32.xlu0 %v1105, 127
        %v1108 = vpop.permute.xlu0 %1107
        %v1110 = vadd.f32 %v1102, %v1108
        %s1111 = sld [smem:[#allocation4 + $0x8]]
        %v1112 = vstv %s1111
        %v1113 = vmul.f32 %v1112, %v1086
        %1115 = vrot.lane.b32.xlu0 %v1113, 126
        %v1116 = vpop.permute.xlu0 %1115
        %v1118 = vadd.f32 %v1110, %v1116
        %s1119 = sld [smem:[#allocation4 + $0x11]]
        %v1120 = vstv %s1119
        %v1121 = vmul.f32 %v1120, %v1091
        %1123 = vrot.lane.b32.xlu0 %v1121, 126
        %v1124 = vpop.permute.xlu0 %1123
        %v1126 = vadd.f32 %v1118, %v1124
        %v1127 = vsub.f32 0.0, %v1126
        %v1128 = vmul.f32 %v1127, 1.442695
        %v1129 = vpow.pop %v1128
        %v1130 = vadd.f32 %v1129, 1.0
        %v1131 = vrcp.pop %v1130
        %v1132 = vlaneseq
        %v1133 = vshrl.u32 %v1132, 7
        %v1134 = vsub.s32 0, %v1133
        %v1135 = vrot.slane %v1131, %v1134
        %1137 = vbcast.lane.b32.xlu0 %v1135, 256
        %v1138 = vpop.permute.xlu0 %1137
        %s1140 = sor.u32 256, 8
        %1141 = vbcast.lane.b32.xlu0 %v1135, %s1140
        %v1142 = vpop.permute.xlu0 %1141
        %v1143 = vlaneseq
        %v1144 = vshrl.u32 %v1143, 7
        %v1145 = vsub.s32 1, %v1144
        %v1146 = vrot.slane %v1131, %v1145
        %1148 = vbcast.lane.b32.xlu0 %v1146, 256
        %v1149 = vpop.permute.xlu0 %1148
        %s1151 = sor.u32 256, 8
        %1152 = vbcast.lane.b32.xlu0 %v1146, %s1151
        %v1153 = vpop.permute.xlu0 %1152
        %v1154 = vlaneseq
        %v1155 = vshrl.u32 %v1154, 7
        %v1156 = vsub.s32 2, %v1155
        %v1157 = vrot.slane %v1131, %v1156
        %1159 = vbcast.lane.b32.xlu0 %v1157, 256
        %v1160 = vpop.permute.xlu0 %1159
        %s1162 = sor.u32 256, 8
        %1163 = vbcast.lane.b32.xlu0 %v1157, %s1162
        %v1164 = vpop.permute.xlu0 %1163
        %v1165 = vlaneseq
        %v1166 = vshrl.u32 %v1165, 7
        %v1167 = vsub.s32 3, %v1166
        %v1168 = vrot.slane %v1131, %v1167
        %1170 = vbcast.lane.b32.xlu0 %v1168, 256
        %v1171 = vpop.permute.xlu0 %1170
        %s1173 = sor.u32 256, 8
        %1174 = vbcast.lane.b32.xlu0 %v1168, %s1173
        %v1175 = vpop.permute.xlu0 %1174
        %v1176 = vlaneseq
        %v1177 = vshrl.u32 %v1176, 7
        %v1178 = vsub.s32 4, %v1177
        %v1179 = vrot.slane %v1131, %v1178
        %1181 = vbcast.lane.b32.xlu0 %v1179, 256
        %v1182 = vpop.permute.xlu0 %1181
        %s1184 = sor.u32 256, 8
        %1185 = vbcast.lane.b32.xlu0 %v1179, %s1184
        %v1186 = vpop.permute.xlu0 %1185
        %v1187 = vlaneseq
        %v1188 = vshrl.u32 %v1187, 7
        %v1189 = vsub.s32 5, %v1188
        %v1190 = vrot.slane %v1131, %v1189
        %1192 = vbcast.lane.b32.xlu0 %v1190, 256
        %v1193 = vpop.permute.xlu0 %1192
        %s1195 = sor.u32 256, 8
        %1196 = vbcast.lane.b32.xlu0 %v1190, %s1195
        %v1197 = vpop.permute.xlu0 %1196
        %v1198 = vlaneseq
        %v1199 = vshrl.u32 %v1198, 7
        %v1200 = vsub.s32 6, %v1199
        %v1201 = vrot.slane %v1131, %v1200
        %1203 = vbcast.lane.b32.xlu0 %v1201, 256
        %v1204 = vpop.permute.xlu0 %1203
        %s1206 = sor.u32 256, 8
        %1207 = vbcast.lane.b32.xlu0 %v1201, %s1206
        %v1208 = vpop.permute.xlu0 %1207
        %v1209 = vlaneseq
        %v1210 = vshrl.u32 %v1209, 7
        %v1211 = vsub.s32 7, %v1210
        %v1212 = vrot.slane %v1131, %v1211
        %1214 = vbcast.lane.b32.xlu0 %v1212, 256
        %v1215 = vpop.permute.xlu0 %1214
        %s1217 = sor.u32 256, 8
        %1218 = vbcast.lane.b32.xlu0 %v1212, %s1217
        %v1219 = vpop.permute.xlu0 %1218
        %v1220 = vmul.f32 %v508, %v1138
        %v1221 = vmul.f32 %v509, %v1138
        %v1222 = vmul.f32 %v510, %v1142
        %v1223 = vmul.f32 %v511, %v1142
        %v1224 = vmul.f32 %v512, %v1149
        %v1225 = vmul.f32 %v513, %v1149
        %v1226 = vmul.f32 %v514, %v1153
        %v1227 = vmul.f32 %v515, %v1153
        %v1228 = vmul.f32 %v516, %v1160
        %v1229 = vmul.f32 %v517, %v1160
        %v1230 = vmul.f32 %v518, %v1164
        %v1231 = vmul.f32 %v519, %v1164
        %v1232 = vmul.f32 %v520, %v1171
        %v1233 = vmul.f32 %v521, %v1171
        %v1234 = vmul.f32 %v522, %v1175
        %v1235 = vmul.f32 %v523, %v1175
        %v1236 = vmul.f32 %v524, %v1182
        %v1237 = vmul.f32 %v525, %v1182
        %v1238 = vmul.f32 %v526, %v1186
        %v1239 = vmul.f32 %v527, %v1186
        %v1240 = vmul.f32 %v528, %v1193
        %v1241 = vmul.f32 %v529, %v1193
        %v1242 = vmul.f32 %v530, %v1197
        %v1243 = vmul.f32 %v531, %v1197
        %v1244 = vmul.f32 %v532, %v1204
        %v1245 = vmul.f32 %v533, %v1204
        %v1246 = vmul.f32 %v534, %v1208
        %v1247 = vmul.f32 %v535, %v1208
        %v1248 = vmul.f32 %v536, %v1215
        %v1249 = vmul.f32 %v537, %v1215
        %v1250 = vmul.f32 %v538, %v1219
        %v1251 = vmul.f32 %v539, %v1219
        %v1252 = vpack.c.bf16 %v1222, %v1220
        %v1253 = vpack.c.bf16 %v1223, %v1221
        %v1254 = vpack.c.bf16 %v1226, %v1224
        %v1255 = vpack.c.bf16 %v1227, %v1225
        %v1256 = vpack.c.bf16 %v1230, %v1228
        %v1257 = vpack.c.bf16 %v1231, %v1229
        %v1258 = vpack.c.bf16 %v1234, %v1232
        %v1259 = vpack.c.bf16 %v1235, %v1233
        %v1260 = vpack.c.bf16 %v1238, %v1236
        %v1261 = vpack.c.bf16 %v1239, %v1237
        %v1262 = vpack.c.bf16 %v1242, %v1240
        %v1263 = vpack.c.bf16 %v1243, %v1241
        %v1264 = vpack.c.bf16 %v1246, %v1244
        %v1265 = vpack.c.bf16 %v1247, %v1245
        %v1266 = vpack.c.bf16 %v1250, %v1248
        %v1267 = vpack.c.bf16 %v1251, %v1249
        %v1284 = vunpack.c.l.b16 %v1252
        %v1285 = vunpack.c.l.b16 %v1253
        %v1286 = vunpack.c.h.b16 %v1252
        %v1287 = vunpack.c.h.b16 %v1253
        %v1288 = vunpack.c.l.b16 %v1254
        %v1289 = vunpack.c.l.b16 %v1255
        %v1290 = vunpack.c.h.b16 %v1254
        %v1291 = vunpack.c.h.b16 %v1255
        %v1292 = vunpack.c.l.b16 %v1256
        %v1293 = vunpack.c.l.b16 %v1257
        %v1294 = vunpack.c.h.b16 %v1256
        %v1295 = vunpack.c.h.b16 %v1257
        %v1296 = vunpack.c.l.b16 %v1258
        %v1297 = vunpack.c.l.b16 %v1259
        %v1298 = vunpack.c.h.b16 %v1258
        %v1299 = vunpack.c.h.b16 %v1259
        %v1300 = vunpack.c.l.b16 %v1260
        %v1301 = vunpack.c.l.b16 %v1261
        %v1302 = vunpack.c.h.b16 %v1260
        %v1303 = vunpack.c.h.b16 %v1261
        %v1304 = vunpack.c.l.b16 %v1262
        %v1305 = vunpack.c.l.b16 %v1263
        %v1306 = vunpack.c.h.b16 %v1262
        %v1307 = vunpack.c.h.b16 %v1263
        %v1308 = vunpack.c.l.b16 %v1264
        %v1309 = vunpack.c.l.b16 %v1265
        %v1310 = vunpack.c.h.b16 %v1264
        %v1311 = vunpack.c.h.b16 %v1265
        %v1312 = vunpack.c.l.b16 %v1266
        %v1313 = vunpack.c.l.b16 %v1267
        %v1314 = vunpack.c.h.b16 %v1266
        %v1315 = vunpack.c.h.b16 %v1267
        %v1316 = vpack.c.b16 %v1285, %v1284
        %v1317 = vpack.c.b16 %v1287, %v1286
        %v1318 = vpack.c.b16 %v1289, %v1288
        %v1319 = vpack.c.b16 %v1291, %v1290
        %v1320 = vpack.c.b16 %v1293, %v1292
        %v1321 = vpack.c.b16 %v1295, %v1294
        %v1322 = vpack.c.b16 %v1297, %v1296
        %v1323 = vpack.c.b16 %v1299, %v1298
        %v1324 = vpack.c.b16 %v1301, %v1300
        %v1325 = vpack.c.b16 %v1303, %v1302
        %v1326 = vpack.c.b16 %v1305, %v1304
        %v1327 = vpack.c.b16 %v1307, %v1306
        %v1328 = vpack.c.b16 %v1309, %v1308
        %v1329 = vpack.c.b16 %v1311, %v1310
        %v1330 = vpack.c.b16 %v1313, %v1312
        %v1331 = vpack.c.b16 %v1315, %v1314
        %1348 = vst [vmem:[%s379] sm:$0xff] %v1316
        %1349 = vst [vmem:[%s379 + $0x8] sm:$0xff] %v1317
        %1350 = vst [vmem:[%s379 + $0x10] sm:$0xff] %v1318
        %1351 = vst [vmem:[%s379 + $0x18] sm:$0xff] %v1319
        %1352 = vst [vmem:[%s379 + $0x20] sm:$0xff] %v1320
        %1353 = vst [vmem:[%s379 + $0x28] sm:$0xff] %v1321
        %1354 = vst [vmem:[%s379 + $0x30] sm:$0xff] %v1322
        %1355 = vst [vmem:[%s379 + $0x38] sm:$0xff] %v1323
        %1356 = vst [vmem:[%s379 + $0x40] sm:$0xff] %v1324
        %1357 = vst [vmem:[%s379 + $0x48] sm:$0xff] %v1325
        %1358 = vst [vmem:[%s379 + $0x50] sm:$0xff] %v1326
        %1359 = vst [vmem:[%s379 + $0x58] sm:$0xff] %v1327
        %1360 = vst [vmem:[%s379 + $0x60] sm:$0xff] %v1328
        %1361 = vst [vmem:[%s379 + $0x68] sm:$0xff] %v1329
        %1362 = vst [vmem:[%s379 + $0x70] sm:$0xff] %v1330
        %1363 = vst [vmem:[%s379 + $0x78] sm:$0xff] %v1331
        %s1364 = sand.u32 %s189, 1
        %s1365 = scalar_lea.sflag [#allocation5], %s1364
        %s1366 = sand.u32 %s189, 1
        %s1367 = smul.addr %s1366, 128
        %s1368 = scalar_lea.vmem [#allocation7], %s1367
        // Predicated region
        $region45: #{_lambda_.3} parent=39 // pred_check
          %p1369 = pneg %p199
        $region46: #{_lambda_.3} parent=39 // pred_check_branch
          %1371 = sbr.rel (%p1369) target = $region48
        $region47: #{_lambda_.3} parent=39 // pred_region
          %s1372 = smul.u32 8, %s25
          %s1373 = ssub.s32 20, %s1372
          %p1374 = scmp.lt.s32.totalorder %s1373, 8
          %s1375 = scalar_select %p1374, %s1373, 8
          %s1376 = smul.u32 64, %s1375
          %s1377 = smul.u32 %s1376, 2
          %s1378 = smul.u32 %s1377, 2
          %s1380 = ssub.s32 2048, %s1378
          %1381 = vsyncadd %s1365, %s1380
          %p1382 = scmp.ne.s32.totalorder 0, %s1378
          %s1383 = smul.addr %s1372, 4
          %s1384 = smul.addr %s24, 80
          %s1385 = sadd.s32 %s1383, %s1384
          %s1386 = smul.addr %s1385, 64
          %s1387 = scalar_lea.hbm %s5, %s1386
          %s1388 = smul.u32 %s1375, 2
          %s1389 = smul.u32 8, %s1388
          %s1390 = sshll.u32 %s1368, 4
          %s1391 = int_to_ptr.vmem [resolvable:$true] %s1390
          %s1392 = sshll.u32 %s1389, 4
          %1396 = dma.vmem_to_hbm [thread:$0]  (%p1382), %s1391, %s1392, %s1387, %s1365, 128, 128, 8
        $region48: #{_lambda_.3} parent=39 // pred_fallthru
          _
      $region40: #{_lambda_.3} parent=5 // pred_fallthru
        _
      %p1397 = scmp.le.s32.totalorder 2, %s15
      // Predicated region
      $region49: #{_lambda_.3} parent=5 // pred_check
        %p1398 = pneg %p1397
      $region50: #{_lambda_.3} parent=5 // pred_check_branch
        %1400 = sbr.rel (%p1398) target = $region52
      $region51: #{_lambda_.3} parent=5 // pred_region
        %s1401 = ssub.s32 %s15, 2
        // Predicated region
        $region53: #{_lambda_.3} parent=51 // pred_check
          %p1402 = pneg %p205
        $region54: #{_lambda_.3} parent=51 // pred_check_branch
          %1404 = sbr.rel (%p1402) target = $region56
        $region55: #{_lambda_.3} parent=51 // pred_region
          %s1405 = sand.u32 %s190, 1
          %s1406 = scalar_lea.sflag [#allocation5], %s1405
          %s1407 = sand.u32 %s190, 1
          %s1408 = smul.addr %s1407, 128
          %s1409 = scalar_lea.vmem [#allocation7], %s1408
          %1410 = dma.done %s1406, 2048
        $region56: #{_lambda_.3} parent=51 // pred_fallthru
          _
      $region52: #{_lambda_.3} parent=5 // pred_fallthru
        _
    $region6: #{_lambda_.3} parent=1 // loop_footer
      %s19 = sadd.s32 1, %s15
    $region7: #{_lambda_.3} parent=1 // loop_footer_branch
      %14 = sbr.rel target = $region3
    $region8: #{_lambda_.3} parent=1 // loop_exit
      _
    %1411 = vsyncpa [#allocation5], 1
    %s1412 = scalar_lea.sflag [#allocation5], 1
    %1413 = vsyncpa %s1412, 1
    %1414 = vsyncpa [#allocation6], 1
    %s1415 = scalar_lea.sflag [#allocation6], 1
    %1416 = vsyncpa %s1415, 1

</llo_original>
